<compile_context>
chip_gen: v6e
topology: v6e:2x2x1
jax: 0.10.0
libtpu: 0.0.40
codegen_flags: <defaults>
</compile_context>

<pallas_src>
import jax
import jax.numpy as jnp
from jax.experimental import pallas as pl
from jax.experimental.pallas import tpu as pltpu

H = 50            # hidden width of each Mu MLP (PyTorch spec)
SLOT = 64         # zero-padded per-network lane slot
N_MU = 10         # number of averaged networks
D = N_MU * SLOT   # 640 fused lane width (multiple of 128)


# ---------------------------------------------------------------------------
# Kernel
# ---------------------------------------------------------------------------
def _avg_mu_kernel(x_ref, w_ref, rows_ref, o_ref):
    # x_ref:    (B, 1)        input scalars, batch on sublanes
    # w_ref:    (2, D, D)     block-diagonal W2 / W3 (right-multiply layout)
    # rows_ref: (6, D)        [w1_row, b1, b2, b3, w4_fold, (b4_fold, 0, ...)]
    # o_ref:    (B, 1)        weighted-average output
    x = x_ref[...]                                   # (B, 1)

    w1 = rows_ref[0:1, :]                            # (1, D)
    b1 = rows_ref[1:2, :]
    b2 = rows_ref[2:3, :]
    b3 = rows_ref[3:4, :]
    w4 = rows_ref[4:5, :]
    b4 = rows_ref[5:6, 0:1]                          # (1, 1) folded scalar bias

    # Layer 1: Linear(1, H) + ReLU for all networks — pure broadcast, off the MXU.
    h = jnp.maximum(x * w1 + b1, 0.0)                # (B, D)

    # Layer 2: Linear(H, H) + ReLU — single MXU matmul against block-diag W2.
    h = jnp.maximum(
        jnp.dot(h, w_ref[0], preferred_element_type=jnp.float32) + b2, 0.0)

    # Layer 3: Linear(H, H) + ReLU — single MXU matmul against block-diag W3.
    h = jnp.maximum(
        jnp.dot(h, w_ref[1], preferred_element_type=jnp.float32) + b3, 0.0)

    # Layer 4 + mixing weights (pre-folded): one lane reduction + scalar add.
    # NOTE: (B,1) output is fine at small B; for large B write batch-on-lanes.
    o_ref[...] = jnp.sum(h * w4, axis=-1, keepdims=True) + b4


# ---------------------------------------------------------------------------
# One-time parameter preparation (hoisted out of the per-call path)
# ---------------------------------------------------------------------------
def prepare_params(weights, w1t, b1, w2, b2, w3, b3, w4t, b4):
    """Pack the stacked per-network parameters into the kernel's two slabs.

    Inputs use right-multiply layout: w1t (n,1,H), w2/w3 (n,H,H), w4t (n,1,H),
    biases b1/b2/b3 (n,H), b4 (n,1). Returns (w_slab (2,D,D), rows (6,D))."""
    w_norm = (weights / jnp.sum(weights)).astype(jnp.float32)   # (n,)

    def block_diag(w):                                          # (n,H,H) -> (D,D)
        wp = jnp.pad(w, ((0, 0), (0, SLOT - H), (0, SLOT - H)))   # (n,64,64)
        eye = jnp.eye(N_MU, dtype=jnp.float32)
        return jnp.einsum('ab,aij->aibj', eye, wp).reshape(D, D)

    def pack_row(v):                                            # (n,H) -> (D,)
        return jnp.pad(v, ((0, 0), (0, SLOT - H))).reshape(-1)

    w_slab = jnp.stack([block_diag(w2), block_diag(w3)])        # (2, D, D)

    row_w1 = pack_row(w1t[:, 0, :])
    row_b1 = pack_row(b1)
    row_b2 = pack_row(b2)
    row_b3 = pack_row(b3)
    row_w4 = pack_row(w_norm[:, None] * w4t[:, 0, :])           # folded mixing wts
    b4_fold = jnp.sum(w_norm * b4[:, 0])                        # scalar
    row_b4 = jnp.zeros((D,), jnp.float32).at[0].set(b4_fold)

    rows = jnp.stack([row_w1, row_b1, row_b2, row_b3, row_w4, row_b4])  # (6, D)
    return w_slab, rows


# ---------------------------------------------------------------------------
# Forward (per-call path: no padding / packing, 3 kernel inputs)
# ---------------------------------------------------------------------------
@jax.jit
def average_mu_forward(x, w_slab, rows):
    """x: (B, 1) float32 -> (B, 1) float32."""
    B = x.shape[0]
    vmem = lambda: pl.BlockSpec(memory_space=pltpu.MemorySpace.VMEM)
    return pl.pallas_call(
        _avg_mu_kernel,
        out_shape=jax.ShapeDtypeStruct((B, 1), jnp.float32),
        in_specs=[vmem(), vmem(), vmem()],
        out_specs=vmem(),
    )(x, w_slab, rows)


# ---------------------------------------------------------------------------
# Initialization + pure-JAX reference
# ---------------------------------------------------------------------------
def init_params(key, n_mu=N_MU, hidden=H):
    """PyTorch-style uniform(-1/sqrt(fan_in), 1/sqrt(fan_in)) init, stacked over
    the n_mu networks, stored in right-multiply (in_features, out_features) layout."""
    ks = jax.random.split(key, 8)

    def u(k, shape, fan_in):
        bound = 1.0 / jnp.sqrt(jnp.float32(fan_in))
        return jax.random.uniform(k, shape, jnp.float32, -bound, bound)

    w1t = u(ks[0], (n_mu, 1, hidden), 1)            # Linear(1, H) weight^T
    b1 = u(ks[1], (n_mu, hidden), 1)
    w2 = u(ks[2], (n_mu, hidden, hidden), hidden)   # Linear(H, H) weight^T
    b2 = u(ks[3], (n_mu, hidden), hidden)
    w3 = u(ks[4], (n_mu, hidden, hidden), hidden)
    b3 = u(ks[5], (n_mu, hidden), hidden)
    w4t = u(ks[6], (n_mu, 1, hidden), hidden)       # Linear(H, 1) weight (as row)
    b4 = u(ks[7], (n_mu, 1), hidden)
    return w1t, b1, w2, b2, w3, b3, w4t, b4


def reference_forward(x, weights, w1t, b1, w2, b2, w3, b3, w4t, b4):
    """Pure-JAX reproduction of AverageMu.forward for validation."""
    total = jnp.zeros((x.shape[0], 1), jnp.float32)
    for i in range(weights.shape[0]):
        h = jax.nn.relu(x * w1t[i] + b1[i])
        h = jax.nn.relu(h @ w2[i] + b2[i])
        h = jax.nn.relu(h @ w3[i] + b3[i])
        out = jnp.sum(h * w4t[i], axis=-1, keepdims=True) + b4[i]
        total = total + weights[i] * out
    return total / jnp.sum(weights)


if __name__ == "__main__":
    key = jax.random.PRNGKey(0)
    k_param, k_x = jax.random.split(key)

    params = init_params(k_param)
    # Non-uniform mixing weights (module default is ones(10); this exercises the
    # weighted average more thoroughly).
    mix_weights = jnp.arange(1, N_MU + 1, dtype=jnp.float32)

    # One-time packing (hoisted out of the per-call forward path).
    w_slab, rows = prepare_params(mix_weights, *params)
    w_slab, rows = jax.block_until_ready((w_slab, rows))

    B = 8
    x = jax.random.normal(k_x, (B, 1), jnp.float32)   # Mu takes scalar inputs v

    y = average_mu_forward(x, w_slab, rows)
    y = jax.block_until_ready(y)

    y_ref = reference_forward(x, mix_weights, *params)
    assert y.shape == (B, 1)
    assert jnp.allclose(y, y_ref, atol=1e-5, rtol=1e-5), (y, y_ref)

    print("KERNEL_OK")
</pallas_src>

<mosaic_0001>
module attributes {stable_mosaic.version = 11 : i64} {
  func.func @_avg_mu_kernel(%arg0: memref<8x1xf32, #tpu.memory_space<vmem>>, %arg1: memref<2x640x640xf32, #tpu.memory_space<vmem>>, %arg2: memref<6x640xf32, #tpu.memory_space<vmem>>, %arg3: memref<8x1xf32, #tpu.memory_space<vmem>>) attributes {dimension_semantics = [], scalar_prefetch = 0 : i64, scratch_operands = 0 : i64, tpu.core_type = #tpu.core_type<tc>} {
    %c0 = arith.constant 0 : index
    %c0_0 = arith.constant 0 : index
    %0 = vector.load %arg0[%c0, %c0_0] : memref<8x1xf32, #tpu.memory_space<vmem>>, vector<8x1xf32>
    %c0_1 = arith.constant 0 : index
    %c0_2 = arith.constant 0 : index
    %1 = vector.load %arg2[%c0_1, %c0_2] : memref<6x640xf32, #tpu.memory_space<vmem>>, vector<1x640xf32>
    %c1 = arith.constant 1 : index
    %c0_3 = arith.constant 0 : index
    %2 = vector.load %arg2[%c1, %c0_3] : memref<6x640xf32, #tpu.memory_space<vmem>>, vector<1x640xf32>
    %c2 = arith.constant 2 : index
    %c0_4 = arith.constant 0 : index
    %3 = vector.load %arg2[%c2, %c0_4] : memref<6x640xf32, #tpu.memory_space<vmem>>, vector<1x640xf32>
    %c3 = arith.constant 3 : index
    %c0_5 = arith.constant 0 : index
    %4 = vector.load %arg2[%c3, %c0_5] : memref<6x640xf32, #tpu.memory_space<vmem>>, vector<1x640xf32>
    %c4 = arith.constant 4 : index
    %c0_6 = arith.constant 0 : index
    %5 = vector.load %arg2[%c4, %c0_6] : memref<6x640xf32, #tpu.memory_space<vmem>>, vector<1x640xf32>
    %c5 = arith.constant 5 : index
    %c0_7 = arith.constant 0 : index
    %6 = vector.load %arg2[%c5, %c0_7] : memref<6x640xf32, #tpu.memory_space<vmem>>, vector<1x1xf32>
    %7 = vector.broadcast %0 : vector<8x1xf32> to vector<8x640xf32>
    %8 = vector.broadcast %1 : vector<1x640xf32> to vector<8x640xf32>
    %9 = arith.mulf %7, %8 : vector<8x640xf32>
    %10 = vector.broadcast %2 : vector<1x640xf32> to vector<8x640xf32>
    %11 = arith.addf %9, %10 : vector<8x640xf32>
    %cst = arith.constant 0.000000e+00 : f32
    %12 = vector.broadcast %cst : f32 to vector<8x640xf32>
    %13 = arith.maximumf %11, %12 : vector<8x640xf32>
    %c0_8 = arith.constant 0 : index
    %c0_9 = arith.constant 0 : index
    %c0_10 = arith.constant 0 : index
    %14 = vector.load %arg1[%c0_8, %c0_9, %c0_10] : memref<2x640x640xf32, #tpu.memory_space<vmem>>, vector<1x640x640xf32>
    %15 = vector.shape_cast %14 : vector<1x640x640xf32> to vector<640x640xf32>
    %cst_11 = arith.constant dense<0.000000e+00> : vector<8x640xf32>
    %16 = tpu.matmul %13, %15, %cst_11 {dimension_numbers = #tpu.dot_dimension_numbers<[1], [0], [0], [1], [0, 0, 1, 1], [], []>} : vector<8x640xf32>, vector<640x640xf32>, vector<8x640xf32> -> vector<8x640xf32>
    %17 = vector.broadcast %3 : vector<1x640xf32> to vector<8x640xf32>
    %18 = arith.addf %16, %17 : vector<8x640xf32>
    %cst_12 = arith.constant 0.000000e+00 : f32
    %19 = vector.broadcast %cst_12 : f32 to vector<8x640xf32>
    %20 = arith.maximumf %18, %19 : vector<8x640xf32>
    %c1_13 = arith.constant 1 : index
    %c0_14 = arith.constant 0 : index
    %c0_15 = arith.constant 0 : index
    %21 = vector.load %arg1[%c1_13, %c0_14, %c0_15] : memref<2x640x640xf32, #tpu.memory_space<vmem>>, vector<1x640x640xf32>
    %22 = vector.shape_cast %21 : vector<1x640x640xf32> to vector<640x640xf32>
    %cst_16 = arith.constant dense<0.000000e+00> : vector<8x640xf32>
    %23 = tpu.matmul %20, %22, %cst_16 {dimension_numbers = #tpu.dot_dimension_numbers<[1], [0], [0], [1], [0, 0, 1, 1], [], []>} : vector<8x640xf32>, vector<640x640xf32>, vector<8x640xf32> -> vector<8x640xf32>
    %24 = vector.broadcast %4 : vector<1x640xf32> to vector<8x640xf32>
    %25 = arith.addf %23, %24 : vector<8x640xf32>
    %cst_17 = arith.constant 0.000000e+00 : f32
    %26 = vector.broadcast %cst_17 : f32 to vector<8x640xf32>
    %27 = arith.maximumf %25, %26 : vector<8x640xf32>
    %28 = vector.broadcast %5 : vector<1x640xf32> to vector<8x640xf32>
    %29 = arith.mulf %27, %28 : vector<8x640xf32>
    %cst_18 = arith.constant dense<0.000000e+00> : vector<8xf32>
    %30 = vector.multi_reduction <add>, %29, %cst_18 [1] : vector<8x640xf32> to vector<8xf32>
    %31 = vector.shape_cast %30 : vector<8xf32> to vector<8x1xf32>
    %32 = vector.broadcast %6 : vector<1x1xf32> to vector<8x1xf32>
    %33 = arith.addf %31, %32 : vector<8x1xf32>
    %c0_19 = arith.constant 0 : index
    %c0_20 = arith.constant 0 : index
    %34 = vector.load %arg3[%c0_19, %c0_20] : memref<8x1xf32, #tpu.memory_space<vmem>>, vector<8x1xf32>
    tpu.vector_store %arg3[%c0_19, %c0_20], %33 {strides = array<i32>} : memref<8x1xf32, #tpu.memory_space<vmem>>, vector<8x1xf32>,
    return
  }
}

</mosaic_0001>

<llo_original>
// kernel: average_mu_forward.1
$region0: #{average_mu_forward.1}
  #allocation0 [shape = 'u32[]', space=smem, size = 0x4, offset = 0x4, fixed_abs, tag = 'smem constant byte address 0x4 - core index']
  #allocation1 [shape = 'u32[144,128]{1,0:T(1,128)}', space=vmem, size = 0x12000, scoped, tag = 'internal scratch']
  %s0 = inlined_call_operand.vmem [shape: f32[8,1], index: 0, kind: input, shape index: {}]
  %s1 = inlined_call_operand.hbm [shape: f32[2,640,640], index: 1, kind: input, shape index: {}]
  %s2 = inlined_call_operand.hbm [shape: f32[6,640], index: 2, kind: input, shape index: {}]
  %s3 = inlined_call_operand.vmem [shape: f32[8,1], index: 3, kind: output, shape index: {}]
  %s4 = sld [smem:[#allocation0]]
  $region30: #{average_mu_forward.1} parent=0
    _
  %s6 = ssub.s32 1, %s4
  %s7 = scalar_select 0, %s6, %s4
  $region1: #{average_mu_forward.1} parent=0
    #allocation2 [shape = 'u8[3276800]{0}', space=vmem, size = 0x320000, scoped, tag = 'input window, operand 1, single buffered']
    #allocation3 [shape = 's32[1]{0}', space=sflag, size = 0x4, scoped, tag = 'scoped memory for average_mu_forward.1']
    #allocation4 [shape = 'u8[20480]{0}', space=vmem, size = 0x5000, scoped, tag = 'input window, operand 2, single buffered']
    #allocation5 [shape = 's32[1]{0}', space=sflag, size = 0x4, scoped, tag = 'scoped memory for average_mu_forward.1']
    %8 = vsyncpa [#allocation3], 0
    %9 = vsyncpa [#allocation5], 0
    // Predicated region
    $region2: #{average_mu_forward.1} parent=1 // pred_check
      _
    $region3: #{average_mu_forward.1} parent=1 // pred_check_branch
      %11 = sbr.rel (0) target = $region5
    $region4: #{average_mu_forward.1} parent=1 // pred_region
      _
    $region5: #{average_mu_forward.1} parent=1 // pred_fallthru
      _
    // Predicated region
    $region6: #{average_mu_forward.1} parent=1 // pred_check
      _
    $region7: #{average_mu_forward.1} parent=1 // pred_check_branch
      %13 = sbr.rel (0) target = $region9
    $region8: #{average_mu_forward.1} parent=1 // pred_region
      %s15 = ssub.s32 102400, 102400
      %16 = vsyncadd [#allocation3], %s15
      %s17 = sshll.u32 [#allocation2], 4
      %s18 = int_to_ptr.vmem [resolvable:$true] %s17
      %23 = dma.hbm_to_vmem [thread:$0]  %s1, 102400, %s18, [#allocation3], 640, 640, 40
    $region9: #{average_mu_forward.1} parent=1 // pred_fallthru
      _
    // Predicated region
    $region10: #{average_mu_forward.1} parent=1 // pred_check
      _
    $region11: #{average_mu_forward.1} parent=1 // pred_check_branch
      %25 = sbr.rel (0) target = $region13
    $region12: #{average_mu_forward.1} parent=1 // pred_region
      %s27 = ssub.s32 640, 640
      %28 = vsyncadd [#allocation5], %s27
      %s30 = sshll.u32 [#allocation4], 4
      %s31 = int_to_ptr.vmem [resolvable:$true] %s30
      %33 = dma.hbm_to_vmem [thread:$0]  %s2, 640, %s31, [#allocation5]
    $region13: #{average_mu_forward.1} parent=1 // pred_fallthru
      _
    // Predicated region
    $region14: #{average_mu_forward.1} parent=1 // pred_check
      _
    $region15: #{average_mu_forward.1} parent=1 // pred_check_branch
      %35 = sbr.rel (0) target = $region17
    $region16: #{average_mu_forward.1} parent=1 // pred_region
      %36 = dma.done [#allocation3], 102400
    $region17: #{average_mu_forward.1} parent=1 // pred_fallthru
      _
    // Predicated region
    $region18: #{average_mu_forward.1} parent=1 // pred_check
      _
    $region19: #{average_mu_forward.1} parent=1 // pred_check_branch
      %38 = sbr.rel (0) target = $region21
    $region20: #{average_mu_forward.1} parent=1 // pred_region
      %39 = dma.done [#allocation5], 640
    $region21: #{average_mu_forward.1} parent=1 // pred_fallthru
      _
    %v40 = vld [vmem:[%s0] sm:$0xff]
    %v41 = vld [vmem:[#allocation4] ss:$8 sm:$0xf]
    %v42 = vld [vmem:[#allocation4] ss:$8 sm:$0x10]
    %v43 = vor.u32 %v41, %v42
    %s44 = scalar_lea.vmem [#allocation4], 1
    %v45 = vld [vmem:[%s44] ss:$8 sm:$0xf]
    %v46 = vld [vmem:[%s44] ss:$8 sm:$0x10]
    %v47 = vor.u32 %v45, %v46
    %s48 = scalar_lea.vmem [#allocation4], 2
    %v49 = vld [vmem:[%s48] ss:$8 sm:$0xf]
    %v50 = vld [vmem:[%s48] ss:$8 sm:$0x10]
    %v51 = vor.u32 %v49, %v50
    %s52 = scalar_lea.vmem [#allocation4], 3
    %v53 = vld [vmem:[%s52] ss:$8 sm:$0xf]
    %v54 = vld [vmem:[%s52] ss:$8 sm:$0x10]
    %v55 = vor.u32 %v53, %v54
    %s56 = scalar_lea.vmem [#allocation4], 4
    %v57 = vld [vmem:[%s56] ss:$8 sm:$0xf]
    %v58 = vld [vmem:[%s56] ss:$8 sm:$0x10]
    %v59 = vor.u32 %v57, %v58
    %v60 = vld [vmem:[#allocation4 + $0x5] ss:$0 sm:$0xff]
    %62 = vset.pattern.permute.xlu0 0
    %63 = vperm.xlu0 %62, %v40
    %v64 = vpop.permute.xlu0 %63
    %v67 = vlaneseq
    %v68 = vshrl.u32 %v67, 7
    %v69 = vsub.s32 0, %v68
    %v70 = vrot.slane %v43, %v69
    %v71 = vlaneseq
    %v72 = vshrl.u32 %v71, 7
    %v73 = vsub.s32 1, %v72
    %v74 = vrot.slane %v43, %v73
    %v75 = vlaneseq
    %v76 = vshrl.u32 %v75, 7
    %v77 = vsub.s32 2, %v76
    %v78 = vrot.slane %v43, %v77
    %v79 = vlaneseq
    %v80 = vshrl.u32 %v79, 7
    %v81 = vsub.s32 3, %v80
    %v82 = vrot.slane %v43, %v81
    %v83 = vlaneseq
    %v84 = vshrl.u32 %v83, 7
    %v85 = vsub.s32 4, %v84
    %v86 = vrot.slane %v43, %v85
    %v92 = vmul.f32 %v64, %v70
    %v93 = vmul.f32 %v64, %v74
    %v94 = vmul.f32 %v64, %v78
    %v95 = vmul.f32 %v64, %v82
    %v96 = vmul.f32 %v64, %v86
    %v98 = vlaneseq
    %v99 = vshrl.u32 %v98, 7
    %v100 = vsub.s32 0, %v99
    %v101 = vrot.slane %v47, %v100
    %v102 = vlaneseq
    %v103 = vshrl.u32 %v102, 7
    %v104 = vsub.s32 1, %v103
    %v105 = vrot.slane %v47, %v104
    %v106 = vlaneseq
    %v107 = vshrl.u32 %v106, 7
    %v108 = vsub.s32 2, %v107
    %v109 = vrot.slane %v47, %v108
    %v110 = vlaneseq
    %v111 = vshrl.u32 %v110, 7
    %v112 = vsub.s32 3, %v111
    %v113 = vrot.slane %v47, %v112
    %v114 = vlaneseq
    %v115 = vshrl.u32 %v114, 7
    %v116 = vsub.s32 4, %v115
    %v117 = vrot.slane %v47, %v116
    %v123 = vadd.f32 %v92, %v101
    %v124 = vadd.f32 %v93, %v105
    %v125 = vadd.f32 %v94, %v109
    %v126 = vadd.f32 %v95, %v113
    %v127 = vadd.f32 %v96, %v117
    %v128 = vmax.f32 %v123, 0.0
    %v129 = vmax.f32 %v124, 0.0
    %v130 = vmax.f32 %v125, 0.0
    %v131 = vmax.f32 %v126, 0.0
    %v132 = vmax.f32 %v127, 0.0
    %v133 = vld [vmem:[#allocation2] sm:$0xff]
    %v134 = vld [vmem:[#allocation2 + $0x8] sm:$0xff]
    %v135 = vld [vmem:[#allocation2 + $0x10] sm:$0xff]
    %v136 = vld [vmem:[#allocation2 + $0x18] sm:$0xff]
    %v137 = vld [vmem:[#allocation2 + $0x20] sm:$0xff]
    %v138 = vld [vmem:[#allocation2 + $0x28] sm:$0xff]
    %v139 = vld [vmem:[#allocation2 + $0x30] sm:$0xff]
    %v140 = vld [vmem:[#allocation2 + $0x38] sm:$0xff]
    %v141 = vld [vmem:[#allocation2 + $0x40] sm:$0xff]
    %v142 = vld [vmem:[#allocation2 + $0x48] sm:$0xff]
    %v143 = vld [vmem:[#allocation2 + $0x50] sm:$0xff]
    %v144 = vld [vmem:[#allocation2 + $0x58] sm:$0xff]
    %v145 = vld [vmem:[#allocation2 + $0x60] sm:$0xff]
    %v146 = vld [vmem:[#allocation2 + $0x68] sm:$0xff]
    %v147 = vld [vmem:[#allocation2 + $0x70] sm:$0xff]
    %v148 = vld [vmem:[#allocation2 + $0x78] sm:$0xff]
    %v149 = vld [vmem:[#allocation2 + $0x80] sm:$0xff]
    %v150 = vld [vmem:[#allocation2 + $0x88] sm:$0xff]
    %v151 = vld [vmem:[#allocation2 + $0x90] sm:$0xff]
    %v152 = vld [vmem:[#allocation2 + $0x98] sm:$0xff]
    %v153 = vld [vmem:[#allocation2 + $0xa0] sm:$0xff]
    %v154 = vld [vmem:[#allocation2 + $0xa8] sm:$0xff]
    %v155 = vld [vmem:[#allocation2 + $0xb0] sm:$0xff]
    %v156 = vld [vmem:[#allocation2 + $0xb8] sm:$0xff]
    %v157 = vld [vmem:[#allocation2 + $0xc0] sm:$0xff]
    %v158 = vld [vmem:[#allocation2 + $0xc8] sm:$0xff]
    %v159 = vld [vmem:[#allocation2 + $0xd0] sm:$0xff]
    %v160 = vld [vmem:[#allocation2 + $0xd8] sm:$0xff]
    %v161 = vld [vmem:[#allocation2 + $0xe0] sm:$0xff]
    %v162 = vld [vmem:[#allocation2 + $0xe8] sm:$0xff]
    %v163 = vld [vmem:[#allocation2 + $0xf0] sm:$0xff]
    %v164 = vld [vmem:[#allocation2 + $0xf8] sm:$0xff]
    %v165 = vld [vmem:[#allocation2 + $0x100] sm:$0xff]
    %v166 = vld [vmem:[#allocation2 + $0x108] sm:$0xff]
    %v167 = vld [vmem:[#allocation2 + $0x110] sm:$0xff]
    %v168 = vld [vmem:[#allocation2 + $0x118] sm:$0xff]
    %v169 = vld [vmem:[#allocation2 + $0x120] sm:$0xff]
    %v170 = vld [vmem:[#allocation2 + $0x128] sm:$0xff]
    %v171 = vld [vmem:[#allocation2 + $0x130] sm:$0xff]
    %v172 = vld [vmem:[#allocation2 + $0x138] sm:$0xff]
    %v173 = vld [vmem:[#allocation2 + $0x140] sm:$0xff]
    %v174 = vld [vmem:[#allocation2 + $0x148] sm:$0xff]
    %v175 = vld [vmem:[#allocation2 + $0x150] sm:$0xff]
    %v176 = vld [vmem:[#allocation2 + $0x158] sm:$0xff]
    %v177 = vld [vmem:[#allocation2 + $0x160] sm:$0xff]
    %v178 = vld [vmem:[#allocation2 + $0x168] sm:$0xff]
    %v179 = vld [vmem:[#allocation2 + $0x170] sm:$0xff]
    %v180 = vld [vmem:[#allocation2 + $0x178] sm:$0xff]
    %v181 = vld [vmem:[#allocation2 + $0x180] sm:$0xff]
    %v182 = vld [vmem:[#allocation2 + $0x188] sm:$0xff]
    %v183 = vld [vmem:[#allocation2 + $0x190] sm:$0xff]
    %v184 = vld [vmem:[#allocation2 + $0x198] sm:$0xff]
    %v185 = vld [vmem:[#allocation2 + $0x1a0] sm:$0xff]
    %v186 = vld [vmem:[#allocation2 + $0x1a8] sm:$0xff]
    %v187 = vld [vmem:[#allocation2 + $0x1b0] sm:$0xff]
    %v188 = vld [vmem:[#allocation2 + $0x1b8] sm:$0xff]
    %v189 = vld [vmem:[#allocation2 + $0x1c0] sm:$0xff]
    %v190 = vld [vmem:[#allocation2 + $0x1c8] sm:$0xff]
    %v191 = vld [vmem:[#allocation2 + $0x1d0] sm:$0xff]
    %v192 = vld [vmem:[#allocation2 + $0x1d8] sm:$0xff]
    %v193 = vld [vmem:[#allocation2 + $0x1e0] sm:$0xff]
    %v194 = vld [vmem:[#allocation2 + $0x1e8] sm:$0xff]
    %v195 = vld [vmem:[#allocation2 + $0x1f0] sm:$0xff]
    %v196 = vld [vmem:[#allocation2 + $0x1f8] sm:$0xff]
    %v197 = vld [vmem:[#allocation2 + $0x200] sm:$0xff]
    %v198 = vld [vmem:[#allocation2 + $0x208] sm:$0xff]
    %v199 = vld [vmem:[#allocation2 + $0x210] sm:$0xff]
    %v200 = vld [vmem:[#allocation2 + $0x218] sm:$0xff]
    %v201 = vld [vmem:[#allocation2 + $0x220] sm:$0xff]
    %v202 = vld [vmem:[#allocation2 + $0x228] sm:$0xff]
    %v203 = vld [vmem:[#allocation2 + $0x230] sm:$0xff]
    %v204 = vld [vmem:[#allocation2 + $0x238] sm:$0xff]
    %v205 = vld [vmem:[#allocation2 + $0x240] sm:$0xff]
    %v206 = vld [vmem:[#allocation2 + $0x248] sm:$0xff]
    %v207 = vld [vmem:[#allocation2 + $0x250] sm:$0xff]
    %v208 = vld [vmem:[#allocation2 + $0x258] sm:$0xff]
    %v209 = vld [vmem:[#allocation2 + $0x260] sm:$0xff]
    %v210 = vld [vmem:[#allocation2 + $0x268] sm:$0xff]
    %v211 = vld [vmem:[#allocation2 + $0x270] sm:$0xff]
    %v212 = vld [vmem:[#allocation2 + $0x278] sm:$0xff]
    %v213 = vld [vmem:[#allocation2 + $0x280] sm:$0xff]
    %v214 = vld [vmem:[#allocation2 + $0x288] sm:$0xff]
    %v215 = vld [vmem:[#allocation2 + $0x290] sm:$0xff]
    %v216 = vld [vmem:[#allocation2 + $0x298] sm:$0xff]
    %v217 = vld [vmem:[#allocation2 + $0x2a0] sm:$0xff]
    %v218 = vld [vmem:[#allocation2 + $0x2a8] sm:$0xff]
    %v219 = vld [vmem:[#allocation2 + $0x2b0] sm:$0xff]
    %v220 = vld [vmem:[#allocation2 + $0x2b8] sm:$0xff]
    %v221 = vld [vmem:[#allocation2 + $0x2c0] sm:$0xff]
    %v222 = vld [vmem:[#allocation2 + $0x2c8] sm:$0xff]
    %v223 = vld [vmem:[#allocation2 + $0x2d0] sm:$0xff]
    %v224 = vld [vmem:[#allocation2 + $0x2d8] sm:$0xff]
    %v225 = vld [vmem:[#allocation2 + $0x2e0] sm:$0xff]
    %v226 = vld [vmem:[#allocation2 + $0x2e8] sm:$0xff]
    %v227 = vld [vmem:[#allocation2 + $0x2f0] sm:$0xff]
    %v228 = vld [vmem:[#allocation2 + $0x2f8] sm:$0xff]
    %v229 = vld [vmem:[#allocation2 + $0x300] sm:$0xff]
    %v230 = vld [vmem:[#allocation2 + $0x308] sm:$0xff]
    %v231 = vld [vmem:[#allocation2 + $0x310] sm:$0xff]
    %v232 = vld [vmem:[#allocation2 + $0x318] sm:$0xff]
    %v233 = vld [vmem:[#allocation2 + $0x320] sm:$0xff]
    %v234 = vld [vmem:[#allocation2 + $0x328] sm:$0xff]
    %v235 = vld [vmem:[#allocation2 + $0x330] sm:$0xff]
    %v236 = vld [vmem:[#allocation2 + $0x338] sm:$0xff]
    %v237 = vld [vmem:[#allocation2 + $0x340] sm:$0xff]
    %v238 = vld [vmem:[#allocation2 + $0x348] sm:$0xff]
    %v239 = vld [vmem:[#allocation2 + $0x350] sm:$0xff]
    %v240 = vld [vmem:[#allocation2 + $0x358] sm:$0xff]
    %v241 = vld [vmem:[#allocation2 + $0x360] sm:$0xff]
    %v242 = vld [vmem:[#allocation2 + $0x368] sm:$0xff]
    %v243 = vld [vmem:[#allocation2 + $0x370] sm:$0xff]
    %v244 = vld [vmem:[#allocation2 + $0x378] sm:$0xff]
    %v245 = vld [vmem:[#allocation2 + $0x380] sm:$0xff]
    %v246 = vld [vmem:[#allocation2 + $0x388] sm:$0xff]
    %v247 = vld [vmem:[#allocation2 + $0x390] sm:$0xff]
    %v248 = vld [vmem:[#allocation2 + $0x398] sm:$0xff]
    %v249 = vld [vmem:[#allocation2 + $0x3a0] sm:$0xff]
    %v250 = vld [vmem:[#allocation2 + $0x3a8] sm:$0xff]
    %v251 = vld [vmem:[#allocation2 + $0x3b0] sm:$0xff]
    %v252 = vld [vmem:[#allocation2 + $0x3b8] sm:$0xff]
    %v253 = vld [vmem:[#allocation2 + $0x3c0] sm:$0xff]
    %v254 = vld [vmem:[#allocation2 + $0x3c8] sm:$0xff]
    %v255 = vld [vmem:[#allocation2 + $0x3d0] sm:$0xff]
    %v256 = vld [vmem:[#allocation2 + $0x3d8] sm:$0xff]
    %v257 = vld [vmem:[#allocation2 + $0x3e0] sm:$0xff]
    %v258 = vld [vmem:[#allocation2 + $0x3e8] sm:$0xff]
    %v259 = vld [vmem:[#allocation2 + $0x3f0] sm:$0xff]
    %v260 = vld [vmem:[#allocation2 + $0x3f8] sm:$0xff]
    %v261 = vld [vmem:[#allocation2 + $0x400] sm:$0xff]
    %v262 = vld [vmem:[#allocation2 + $0x408] sm:$0xff]
    %v263 = vld [vmem:[#allocation2 + $0x410] sm:$0xff]
    %v264 = vld [vmem:[#allocation2 + $0x418] sm:$0xff]
    %v265 = vld [vmem:[#allocation2 + $0x420] sm:$0xff]
    %v266 = vld [vmem:[#allocation2 + $0x428] sm:$0xff]
    %v267 = vld [vmem:[#allocation2 + $0x430] sm:$0xff]
    %v268 = vld [vmem:[#allocation2 + $0x438] sm:$0xff]
    %v269 = vld [vmem:[#allocation2 + $0x440] sm:$0xff]
    %v270 = vld [vmem:[#allocation2 + $0x448] sm:$0xff]
    %v271 = vld [vmem:[#allocation2 + $0x450] sm:$0xff]
    %v272 = vld [vmem:[#allocation2 + $0x458] sm:$0xff]
    %v273 = vld [vmem:[#allocation2 + $0x460] sm:$0xff]
    %v274 = vld [vmem:[#allocation2 + $0x468] sm:$0xff]
    %v275 = vld [vmem:[#allocation2 + $0x470] sm:$0xff]
    %v276 = vld [vmem:[#allocation2 + $0x478] sm:$0xff]
    %v277 = vld [vmem:[#allocation2 + $0x480] sm:$0xff]
    %v278 = vld [vmem:[#allocation2 + $0x488] sm:$0xff]
    %v279 = vld [vmem:[#allocation2 + $0x490] sm:$0xff]
    %v280 = vld [vmem:[#allocation2 + $0x498] sm:$0xff]
    %v281 = vld [vmem:[#allocation2 + $0x4a0] sm:$0xff]
    %v282 = vld [vmem:[#allocation2 + $0x4a8] sm:$0xff]
    %v283 = vld [vmem:[#allocation2 + $0x4b0] sm:$0xff]
    %v284 = vld [vmem:[#allocation2 + $0x4b8] sm:$0xff]
    %v285 = vld [vmem:[#allocation2 + $0x4c0] sm:$0xff]
    %v286 = vld [vmem:[#allocation2 + $0x4c8] sm:$0xff]
    %v287 = vld [vmem:[#allocation2 + $0x4d0] sm:$0xff]
    %v288 = vld [vmem:[#allocation2 + $0x4d8] sm:$0xff]
    %v289 = vld [vmem:[#allocation2 + $0x4e0] sm:$0xff]
    %v290 = vld [vmem:[#allocation2 + $0x4e8] sm:$0xff]
    %v291 = vld [vmem:[#allocation2 + $0x4f0] sm:$0xff]
    %v292 = vld [vmem:[#allocation2 + $0x4f8] sm:$0xff]
    %v293 = vld [vmem:[#allocation2 + $0x500] sm:$0xff]
    %v294 = vld [vmem:[#allocation2 + $0x508] sm:$0xff]
    %v295 = vld [vmem:[#allocation2 + $0x510] sm:$0xff]
    %v296 = vld [vmem:[#allocation2 + $0x518] sm:$0xff]
    %v297 = vld [vmem:[#allocation2 + $0x520] sm:$0xff]
    %v298 = vld [vmem:[#allocation2 + $0x528] sm:$0xff]
    %v299 = vld [vmem:[#allocation2 + $0x530] sm:$0xff]
    %v300 = vld [vmem:[#allocation2 + $0x538] sm:$0xff]
    %v301 = vld [vmem:[#allocation2 + $0x540] sm:$0xff]
    %v302 = vld [vmem:[#allocation2 + $0x548] sm:$0xff]
    %v303 = vld [vmem:[#allocation2 + $0x550] sm:$0xff]
    %v304 = vld [vmem:[#allocation2 + $0x558] sm:$0xff]
    %v305 = vld [vmem:[#allocation2 + $0x560] sm:$0xff]
    %v306 = vld [vmem:[#allocation2 + $0x568] sm:$0xff]
    %v307 = vld [vmem:[#allocation2 + $0x570] sm:$0xff]
    %v308 = vld [vmem:[#allocation2 + $0x578] sm:$0xff]
    %v309 = vld [vmem:[#allocation2 + $0x580] sm:$0xff]
    %v310 = vld [vmem:[#allocation2 + $0x588] sm:$0xff]
    %v311 = vld [vmem:[#allocation2 + $0x590] sm:$0xff]
    %v312 = vld [vmem:[#allocation2 + $0x598] sm:$0xff]
    %v313 = vld [vmem:[#allocation2 + $0x5a0] sm:$0xff]
    %v314 = vld [vmem:[#allocation2 + $0x5a8] sm:$0xff]
    %v315 = vld [vmem:[#allocation2 + $0x5b0] sm:$0xff]
    %v316 = vld [vmem:[#allocation2 + $0x5b8] sm:$0xff]
    %v317 = vld [vmem:[#allocation2 + $0x5c0] sm:$0xff]
    %v318 = vld [vmem:[#allocation2 + $0x5c8] sm:$0xff]
    %v319 = vld [vmem:[#allocation2 + $0x5d0] sm:$0xff]
    %v320 = vld [vmem:[#allocation2 + $0x5d8] sm:$0xff]
    %v321 = vld [vmem:[#allocation2 + $0x5e0] sm:$0xff]
    %v322 = vld [vmem:[#allocation2 + $0x5e8] sm:$0xff]
    %v323 = vld [vmem:[#allocation2 + $0x5f0] sm:$0xff]
    %v324 = vld [vmem:[#allocation2 + $0x5f8] sm:$0xff]
    %v325 = vld [vmem:[#allocation2 + $0x600] sm:$0xff]
    %v326 = vld [vmem:[#allocation2 + $0x608] sm:$0xff]
    %v327 = vld [vmem:[#allocation2 + $0x610] sm:$0xff]
    %v328 = vld [vmem:[#allocation2 + $0x618] sm:$0xff]
    %v329 = vld [vmem:[#allocation2 + $0x620] sm:$0xff]
    %v330 = vld [vmem:[#allocation2 + $0x628] sm:$0xff]
    %v331 = vld [vmem:[#allocation2 + $0x630] sm:$0xff]
    %v332 = vld [vmem:[#allocation2 + $0x638] sm:$0xff]
    %v333 = vld [vmem:[#allocation2 + $0x640] sm:$0xff]
    %v334 = vld [vmem:[#allocation2 + $0x648] sm:$0xff]
    %v335 = vld [vmem:[#allocation2 + $0x650] sm:$0xff]
    %v336 = vld [vmem:[#allocation2 + $0x658] sm:$0xff]
    %v337 = vld [vmem:[#allocation2 + $0x660] sm:$0xff]
    %v338 = vld [vmem:[#allocation2 + $0x668] sm:$0xff]
    %v339 = vld [vmem:[#allocation2 + $0x670] sm:$0xff]
    %v340 = vld [vmem:[#allocation2 + $0x678] sm:$0xff]
    %v341 = vld [vmem:[#allocation2 + $0x680] sm:$0xff]
    %v342 = vld [vmem:[#allocation2 + $0x688] sm:$0xff]
    %v343 = vld [vmem:[#allocation2 + $0x690] sm:$0xff]
    %v344 = vld [vmem:[#allocation2 + $0x698] sm:$0xff]
    %v345 = vld [vmem:[#allocation2 + $0x6a0] sm:$0xff]
    %v346 = vld [vmem:[#allocation2 + $0x6a8] sm:$0xff]
    %v347 = vld [vmem:[#allocation2 + $0x6b0] sm:$0xff]
    %v348 = vld [vmem:[#allocation2 + $0x6b8] sm:$0xff]
    %v349 = vld [vmem:[#allocation2 + $0x6c0] sm:$0xff]
    %v350 = vld [vmem:[#allocation2 + $0x6c8] sm:$0xff]
    %v351 = vld [vmem:[#allocation2 + $0x6d0] sm:$0xff]
    %v352 = vld [vmem:[#allocation2 + $0x6d8] sm:$0xff]
    %v353 = vld [vmem:[#allocation2 + $0x6e0] sm:$0xff]
    %v354 = vld [vmem:[#allocation2 + $0x6e8] sm:$0xff]
    %v355 = vld [vmem:[#allocation2 + $0x6f0] sm:$0xff]
    %v356 = vld [vmem:[#allocation2 + $0x6f8] sm:$0xff]
    %v357 = vld [vmem:[#allocation2 + $0x700] sm:$0xff]
    %v358 = vld [vmem:[#allocation2 + $0x708] sm:$0xff]
    %v359 = vld [vmem:[#allocation2 + $0x710] sm:$0xff]
    %v360 = vld [vmem:[#allocation2 + $0x718] sm:$0xff]
    %v361 = vld [vmem:[#allocation2 + $0x720] sm:$0xff]
    %v362 = vld [vmem:[#allocation2 + $0x728] sm:$0xff]
    %v363 = vld [vmem:[#allocation2 + $0x730] sm:$0xff]
    %v364 = vld [vmem:[#allocation2 + $0x738] sm:$0xff]
    %v365 = vld [vmem:[#allocation2 + $0x740] sm:$0xff]
    %v366 = vld [vmem:[#allocation2 + $0x748] sm:$0xff]
    %v367 = vld [vmem:[#allocation2 + $0x750] sm:$0xff]
    %v368 = vld [vmem:[#allocation2 + $0x758] sm:$0xff]
    %v369 = vld [vmem:[#allocation2 + $0x760] sm:$0xff]
    %v370 = vld [vmem:[#allocation2 + $0x768] sm:$0xff]
    %v371 = vld [vmem:[#allocation2 + $0x770] sm:$0xff]
    %v372 = vld [vmem:[#allocation2 + $0x778] sm:$0xff]
    %v373 = vld [vmem:[#allocation2 + $0x780] sm:$0xff]
    %v374 = vld [vmem:[#allocation2 + $0x788] sm:$0xff]
    %v375 = vld [vmem:[#allocation2 + $0x790] sm:$0xff]
    %v376 = vld [vmem:[#allocation2 + $0x798] sm:$0xff]
    %v377 = vld [vmem:[#allocation2 + $0x7a0] sm:$0xff]
    %v378 = vld [vmem:[#allocation2 + $0x7a8] sm:$0xff]
    %v379 = vld [vmem:[#allocation2 + $0x7b0] sm:$0xff]
    %v380 = vld [vmem:[#allocation2 + $0x7b8] sm:$0xff]
    %v381 = vld [vmem:[#allocation2 + $0x7c0] sm:$0xff]
    %v382 = vld [vmem:[#allocation2 + $0x7c8] sm:$0xff]
    %v383 = vld [vmem:[#allocation2 + $0x7d0] sm:$0xff]
    %v384 = vld [vmem:[#allocation2 + $0x7d8] sm:$0xff]
    %v385 = vld [vmem:[#allocation2 + $0x7e0] sm:$0xff]
    %v386 = vld [vmem:[#allocation2 + $0x7e8] sm:$0xff]
    %v387 = vld [vmem:[#allocation2 + $0x7f0] sm:$0xff]
    %v388 = vld [vmem:[#allocation2 + $0x7f8] sm:$0xff]
    %v389 = vld [vmem:[#allocation2 + $0x800] sm:$0xff]
    %v390 = vld [vmem:[#allocation2 + $0x808] sm:$0xff]
    %v391 = vld [vmem:[#allocation2 + $0x810] sm:$0xff]
    %v392 = vld [vmem:[#allocation2 + $0x818] sm:$0xff]
    %v393 = vld [vmem:[#allocation2 + $0x820] sm:$0xff]
    %v394 = vld [vmem:[#allocation2 + $0x828] sm:$0xff]
    %v395 = vld [vmem:[#allocation2 + $0x830] sm:$0xff]
    %v396 = vld [vmem:[#allocation2 + $0x838] sm:$0xff]
    %v397 = vld [vmem:[#allocation2 + $0x840] sm:$0xff]
    %v398 = vld [vmem:[#allocation2 + $0x848] sm:$0xff]
    %v399 = vld [vmem:[#allocation2 + $0x850] sm:$0xff]
    %v400 = vld [vmem:[#allocation2 + $0x858] sm:$0xff]
    %v401 = vld [vmem:[#allocation2 + $0x860] sm:$0xff]
    %v402 = vld [vmem:[#allocation2 + $0x868] sm:$0xff]
    %v403 = vld [vmem:[#allocation2 + $0x870] sm:$0xff]
    %v404 = vld [vmem:[#allocation2 + $0x878] sm:$0xff]
    %v405 = vld [vmem:[#allocation2 + $0x880] sm:$0xff]
    %v406 = vld [vmem:[#allocation2 + $0x888] sm:$0xff]
    %v407 = vld [vmem:[#allocation2 + $0x890] sm:$0xff]
    %v408 = vld [vmem:[#allocation2 + $0x898] sm:$0xff]
    %v409 = vld [vmem:[#allocation2 + $0x8a0] sm:$0xff]
    %v410 = vld [vmem:[#allocation2 + $0x8a8] sm:$0xff]
    %v411 = vld [vmem:[#allocation2 + $0x8b0] sm:$0xff]
    %v412 = vld [vmem:[#allocation2 + $0x8b8] sm:$0xff]
    %v413 = vld [vmem:[#allocation2 + $0x8c0] sm:$0xff]
    %v414 = vld [vmem:[#allocation2 + $0x8c8] sm:$0xff]
    %v415 = vld [vmem:[#allocation2 + $0x8d0] sm:$0xff]
    %v416 = vld [vmem:[#allocation2 + $0x8d8] sm:$0xff]
    %v417 = vld [vmem:[#allocation2 + $0x8e0] sm:$0xff]
    %v418 = vld [vmem:[#allocation2 + $0x8e8] sm:$0xff]
    %v419 = vld [vmem:[#allocation2 + $0x8f0] sm:$0xff]
    %v420 = vld [vmem:[#allocation2 + $0x8f8] sm:$0xff]
    %v421 = vld [vmem:[#allocation2 + $0x900] sm:$0xff]
    %v422 = vld [vmem:[#allocation2 + $0x908] sm:$0xff]
    %v423 = vld [vmem:[#allocation2 + $0x910] sm:$0xff]
    %v424 = vld [vmem:[#allocation2 + $0x918] sm:$0xff]
    %v425 = vld [vmem:[#allocation2 + $0x920] sm:$0xff]
    %v426 = vld [vmem:[#allocation2 + $0x928] sm:$0xff]
    %v427 = vld [vmem:[#allocation2 + $0x930] sm:$0xff]
    %v428 = vld [vmem:[#allocation2 + $0x938] sm:$0xff]
    %v429 = vld [vmem:[#allocation2 + $0x940] sm:$0xff]
    %v430 = vld [vmem:[#allocation2 + $0x948] sm:$0xff]
    %v431 = vld [vmem:[#allocation2 + $0x950] sm:$0xff]
    %v432 = vld [vmem:[#allocation2 + $0x958] sm:$0xff]
    %v433 = vld [vmem:[#allocation2 + $0x960] sm:$0xff]
    %v434 = vld [vmem:[#allocation2 + $0x968] sm:$0xff]
    %v435 = vld [vmem:[#allocation2 + $0x970] sm:$0xff]
    %v436 = vld [vmem:[#allocation2 + $0x978] sm:$0xff]
    %v437 = vld [vmem:[#allocation2 + $0x980] sm:$0xff]
    %v438 = vld [vmem:[#allocation2 + $0x988] sm:$0xff]
    %v439 = vld [vmem:[#allocation2 + $0x990] sm:$0xff]
    %v440 = vld [vmem:[#allocation2 + $0x998] sm:$0xff]
    %v441 = vld [vmem:[#allocation2 + $0x9a0] sm:$0xff]
    %v442 = vld [vmem:[#allocation2 + $0x9a8] sm:$0xff]
    %v443 = vld [vmem:[#allocation2 + $0x9b0] sm:$0xff]
    %v444 = vld [vmem:[#allocation2 + $0x9b8] sm:$0xff]
    %v445 = vld [vmem:[#allocation2 + $0x9c0] sm:$0xff]
    %v446 = vld [vmem:[#allocation2 + $0x9c8] sm:$0xff]
    %v447 = vld [vmem:[#allocation2 + $0x9d0] sm:$0xff]
    %v448 = vld [vmem:[#allocation2 + $0x9d8] sm:$0xff]
    %v449 = vld [vmem:[#allocation2 + $0x9e0] sm:$0xff]
    %v450 = vld [vmem:[#allocation2 + $0x9e8] sm:$0xff]
    %v451 = vld [vmem:[#allocation2 + $0x9f0] sm:$0xff]
    %v452 = vld [vmem:[#allocation2 + $0x9f8] sm:$0xff]
    %v453 = vld [vmem:[#allocation2 + $0xa00] sm:$0xff]
    %v454 = vld [vmem:[#allocation2 + $0xa08] sm:$0xff]
    %v455 = vld [vmem:[#allocation2 + $0xa10] sm:$0xff]
    %v456 = vld [vmem:[#allocation2 + $0xa18] sm:$0xff]
    %v457 = vld [vmem:[#allocation2 + $0xa20] sm:$0xff]
    %v458 = vld [vmem:[#allocation2 + $0xa28] sm:$0xff]
    %v459 = vld [vmem:[#allocation2 + $0xa30] sm:$0xff]
    %v460 = vld [vmem:[#allocation2 + $0xa38] sm:$0xff]
    %v461 = vld [vmem:[#allocation2 + $0xa40] sm:$0xff]
    %v462 = vld [vmem:[#allocation2 + $0xa48] sm:$0xff]
    %v463 = vld [vmem:[#allocation2 + $0xa50] sm:$0xff]
    %v464 = vld [vmem:[#allocation2 + $0xa58] sm:$0xff]
    %v465 = vld [vmem:[#allocation2 + $0xa60] sm:$0xff]
    %v466 = vld [vmem:[#allocation2 + $0xa68] sm:$0xff]
    %v467 = vld [vmem:[#allocation2 + $0xa70] sm:$0xff]
    %v468 = vld [vmem:[#allocation2 + $0xa78] sm:$0xff]
    %v469 = vld [vmem:[#allocation2 + $0xa80] sm:$0xff]
    %v470 = vld [vmem:[#allocation2 + $0xa88] sm:$0xff]
    %v471 = vld [vmem:[#allocation2 + $0xa90] sm:$0xff]
    %v472 = vld [vmem:[#allocation2 + $0xa98] sm:$0xff]
    %v473 = vld [vmem:[#allocation2 + $0xaa0] sm:$0xff]
    %v474 = vld [vmem:[#allocation2 + $0xaa8] sm:$0xff]
    %v475 = vld [vmem:[#allocation2 + $0xab0] sm:$0xff]
    %v476 = vld [vmem:[#allocation2 + $0xab8] sm:$0xff]
    %v477 = vld [vmem:[#allocation2 + $0xac0] sm:$0xff]
    %v478 = vld [vmem:[#allocation2 + $0xac8] sm:$0xff]
    %v479 = vld [vmem:[#allocation2 + $0xad0] sm:$0xff]
    %v480 = vld [vmem:[#allocation2 + $0xad8] sm:$0xff]
    %v481 = vld [vmem:[#allocation2 + $0xae0] sm:$0xff]
    %v482 = vld [vmem:[#allocation2 + $0xae8] sm:$0xff]
    %v483 = vld [vmem:[#allocation2 + $0xaf0] sm:$0xff]
    %v484 = vld [vmem:[#allocation2 + $0xaf8] sm:$0xff]
    %v485 = vld [vmem:[#allocation2 + $0xb00] sm:$0xff]
    %v486 = vld [vmem:[#allocation2 + $0xb08] sm:$0xff]
    %v487 = vld [vmem:[#allocation2 + $0xb10] sm:$0xff]
    %v488 = vld [vmem:[#allocation2 + $0xb18] sm:$0xff]
    %v489 = vld [vmem:[#allocation2 + $0xb20] sm:$0xff]
    %v490 = vld [vmem:[#allocation2 + $0xb28] sm:$0xff]
    %v491 = vld [vmem:[#allocation2 + $0xb30] sm:$0xff]
    %v492 = vld [vmem:[#allocation2 + $0xb38] sm:$0xff]
    %v493 = vld [vmem:[#allocation2 + $0xb40] sm:$0xff]
    %v494 = vld [vmem:[#allocation2 + $0xb48] sm:$0xff]
    %v495 = vld [vmem:[#allocation2 + $0xb50] sm:$0xff]
    %v496 = vld [vmem:[#allocation2 + $0xb58] sm:$0xff]
    %v497 = vld [vmem:[#allocation2 + $0xb60] sm:$0xff]
    %v498 = vld [vmem:[#allocation2 + $0xb68] sm:$0xff]
    %v499 = vld [vmem:[#allocation2 + $0xb70] sm:$0xff]
    %v500 = vld [vmem:[#allocation2 + $0xb78] sm:$0xff]
    %v501 = vld [vmem:[#allocation2 + $0xb80] sm:$0xff]
    %v502 = vld [vmem:[#allocation2 + $0xb88] sm:$0xff]
    %v503 = vld [vmem:[#allocation2 + $0xb90] sm:$0xff]
    %v504 = vld [vmem:[#allocation2 + $0xb98] sm:$0xff]
    %v505 = vld [vmem:[#allocation2 + $0xba0] sm:$0xff]
    %v506 = vld [vmem:[#allocation2 + $0xba8] sm:$0xff]
    %v507 = vld [vmem:[#allocation2 + $0xbb0] sm:$0xff]
    %v508 = vld [vmem:[#allocation2 + $0xbb8] sm:$0xff]
    %v509 = vld [vmem:[#allocation2 + $0xbc0] sm:$0xff]
    %v510 = vld [vmem:[#allocation2 + $0xbc8] sm:$0xff]
    %v511 = vld [vmem:[#allocation2 + $0xbd0] sm:$0xff]
    %v512 = vld [vmem:[#allocation2 + $0xbd8] sm:$0xff]
    %v513 = vld [vmem:[#allocation2 + $0xbe0] sm:$0xff]
    %v514 = vld [vmem:[#allocation2 + $0xbe8] sm:$0xff]
    %v515 = vld [vmem:[#allocation2 + $0xbf0] sm:$0xff]
    %v516 = vld [vmem:[#allocation2 + $0xbf8] sm:$0xff]
    %v517 = vld [vmem:[#allocation2 + $0xc00] sm:$0xff]
    %v518 = vld [vmem:[#allocation2 + $0xc08] sm:$0xff]
    %v519 = vld [vmem:[#allocation2 + $0xc10] sm:$0xff]
    %v520 = vld [vmem:[#allocation2 + $0xc18] sm:$0xff]
    %v521 = vld [vmem:[#allocation2 + $0xc20] sm:$0xff]
    %v522 = vld [vmem:[#allocation2 + $0xc28] sm:$0xff]
    %v523 = vld [vmem:[#allocation2 + $0xc30] sm:$0xff]
    %v524 = vld [vmem:[#allocation2 + $0xc38] sm:$0xff]
    %v525 = vld [vmem:[#allocation2 + $0xc40] sm:$0xff]
    %v526 = vld [vmem:[#allocation2 + $0xc48] sm:$0xff]
    %v527 = vld [vmem:[#allocation2 + $0xc50] sm:$0xff]
    %v528 = vld [vmem:[#allocation2 + $0xc58] sm:$0xff]
    %v529 = vld [vmem:[#allocation2 + $0xc60] sm:$0xff]
    %v530 = vld [vmem:[#allocation2 + $0xc68] sm:$0xff]
    %v531 = vld [vmem:[#allocation2 + $0xc70] sm:$0xff]
    %v532 = vld [vmem:[#allocation2 + $0xc78] sm:$0xff]
    %v534 = vlaneseq
    %v535 = vshrl.u32 %v534, 7
    %v536 = vsub.s32 0, %v535
    %v537 = vrot.slane %v51, %v536
    %v538 = vlaneseq
    %v539 = vshrl.u32 %v538, 7
    %v540 = vsub.s32 1, %v539
    %v541 = vrot.slane %v51, %v540
    %v542 = vlaneseq
    %v543 = vshrl.u32 %v542, 7
    %v544 = vsub.s32 2, %v543
    %v545 = vrot.slane %v51, %v544
    %v546 = vlaneseq
    %v547 = vshrl.u32 %v546, 7
    %v548 = vsub.s32 3, %v547
    %v549 = vrot.slane %v51, %v548
    %v550 = vlaneseq
    %v551 = vshrl.u32 %v550, 7
    %v552 = vsub.s32 4, %v551
    %v553 = vrot.slane %v51, %v552
    %559 = vmatprep.subr.mxu0 %v209
    %560 = vmatpush1.msra.mxu0 %v208
    %561 = vmatprep.subr.mxu0 %v204
    %562 = vmatpush1.msra.mxu0 %v203
    %563 = vmatprep.subr.mxu0 %v199
    %564 = vmatpush1.msra.mxu0 %v198
    %565 = vmatprep.subr.mxu0 %v194
    %566 = vmatpush1.msra.mxu0 %v193
    %567 = vmatprep.subr.mxu0 %v189
    %568 = vmatpush1.msra.mxu0 %v188
    %569 = vmatprep.subr.mxu0 %v184
    %570 = vmatpush1.msra.mxu0 %v183
    %571 = vmatprep.subr.mxu0 %v179
    %572 = vmatpush1.msra.mxu0 %v178
    %573 = vmatprep.subr.mxu0 %v174
    %574 = vmatpush1.msra.mxu0 %v173
    %575 = vmatprep.subr.mxu0 %v169
    %576 = vmatpush1.msra.mxu0 %v168
    %577 = vmatprep.subr.mxu0 %v164
    %578 = vmatpush1.msra.mxu0 %v163
    %579 = vmatprep.subr.mxu0 %v159
    %580 = vmatpush1.msra.mxu0 %v158
    %581 = vmatprep.subr.mxu0 %v154
    %582 = vmatpush1.msra.mxu0 %v153
    %583 = vmatprep.subr.mxu0 %v149
    %584 = vmatpush1.msra.mxu0 %v148
    %585 = vmatprep.subr.mxu0 %v144
    %586 = vmatpush1.msra.mxu0 %v143
    %587 = vmatprep.subr.mxu0 %v139
    %588 = vmatpush1.msra.mxu0 %v138
    %589 = vmatprep.subr.mxu0 %v134
    %590 = vmatpush1.msra.mxu0 %v133
    %591 = vmatprep.subr.mxu0 %v289
    %592 = vmatpush2.msra.mxu0 %v288
    %593 = vmatprep.subr.mxu0 %v284
    %594 = vmatpush2.msra.mxu0 %v283
    %595 = vmatprep.subr.mxu0 %v279
    %596 = vmatpush2.msra.mxu0 %v278
    %597 = vmatprep.subr.mxu0 %v274
    %598 = vmatpush2.msra.mxu0 %v273
    %599 = vmatprep.subr.mxu0 %v269
    %600 = vmatpush2.msra.mxu0 %v268
    %601 = vmatprep.subr.mxu0 %v264
    %602 = vmatpush2.msra.mxu0 %v263
    %603 = vmatprep.subr.mxu0 %v259
    %604 = vmatpush2.msra.mxu0 %v258
    %605 = vmatprep.subr.mxu0 %v254
    %606 = vmatpush2.msra.mxu0 %v253
    %607 = vmatprep.subr.mxu0 %v249
    %608 = vmatpush2.msra.mxu0 %v248
    %609 = vmatprep.subr.mxu0 %v244
    %610 = vmatpush2.msra.mxu0 %v243
    %611 = vmatprep.subr.mxu0 %v239
    %612 = vmatpush2.msra.mxu0 %v238
    %613 = vmatprep.subr.mxu0 %v234
    %614 = vmatpush2.msra.mxu0 %v233
    %615 = vmatprep.subr.mxu0 %v229
    %616 = vmatpush2.msra.mxu0 %v228
    %617 = vmatprep.subr.mxu0 %v224
    %618 = vmatpush2.msra.mxu0 %v223
    %619 = vmatprep.subr.mxu0 %v219
    %620 = vmatpush2.msra.mxu0 %v218
    %621 = vmatprep.subr.mxu0 %v214
    %622 = vmatpush2.msra.mxu0 %v213
    %623 = vmatprep.mubr.f32.mxu0 %v129
    %624 = vmatmul.mubr.f32.gmra.mxu0 %v128
    %v625 = vpop.f32.mrf.mxu0
    %v626 = vadd.f32 %v537, %v625
    %v627 = vpop.f32.mrf.mxu0
    %v628 = vadd.f32 %v541, %v627
    %629 = vdwg.mxu0
    %630 = vmatprep.subr.mxu0 %v369
    %631 = vmatpush1.msra.mxu0 %v368
    %632 = vmatprep.subr.mxu0 %v364
    %633 = vmatpush1.msra.mxu0 %v363
    %634 = vmatprep.subr.mxu0 %v359
    %635 = vmatpush1.msra.mxu0 %v358
    %636 = vmatprep.subr.mxu0 %v354
    %637 = vmatpush1.msra.mxu0 %v353
    %638 = vmatprep.subr.mxu0 %v349
    %639 = vmatpush1.msra.mxu0 %v348
    %640 = vmatprep.subr.mxu0 %v344
    %641 = vmatpush1.msra.mxu0 %v343
    %642 = vmatprep.subr.mxu0 %v339
    %643 = vmatpush1.msra.mxu0 %v338
    %644 = vmatprep.subr.mxu0 %v334
    %645 = vmatpush1.msra.mxu0 %v333
    %646 = vmatprep.subr.mxu0 %v329
    %647 = vmatpush1.msra.mxu0 %v328
    %648 = vmatprep.subr.mxu0 %v324
    %649 = vmatpush1.msra.mxu0 %v323
    %650 = vmatprep.subr.mxu0 %v319
    %651 = vmatpush1.msra.mxu0 %v318
    %652 = vmatprep.subr.mxu0 %v314
    %653 = vmatpush1.msra.mxu0 %v313
    %654 = vmatprep.subr.mxu0 %v309
    %655 = vmatpush1.msra.mxu0 %v308
    %656 = vmatprep.subr.mxu0 %v304
    %657 = vmatpush1.msra.mxu0 %v303
    %658 = vmatprep.subr.mxu0 %v299
    %659 = vmatpush1.msra.mxu0 %v298
    %660 = vmatprep.subr.mxu0 %v294
    %661 = vmatpush1.msra.mxu0 %v293
    %662 = vmatprep.subr.mxu0 %v449
    %663 = vmatpush2.msra.mxu0 %v448
    %664 = vmatprep.subr.mxu0 %v444
    %665 = vmatpush2.msra.mxu0 %v443
    %666 = vmatprep.subr.mxu0 %v439
    %667 = vmatpush2.msra.mxu0 %v438
    %668 = vmatprep.subr.mxu0 %v434
    %669 = vmatpush2.msra.mxu0 %v433
    %670 = vmatprep.subr.mxu0 %v429
    %671 = vmatpush2.msra.mxu0 %v428
    %672 = vmatprep.subr.mxu0 %v424
    %673 = vmatpush2.msra.mxu0 %v423
    %674 = vmatprep.subr.mxu0 %v419
    %675 = vmatpush2.msra.mxu0 %v418
    %676 = vmatprep.subr.mxu0 %v414
    %677 = vmatpush2.msra.mxu0 %v413
    %678 = vmatprep.subr.mxu0 %v409
    %679 = vmatpush2.msra.mxu0 %v408
    %680 = vmatprep.subr.mxu0 %v404
    %681 = vmatpush2.msra.mxu0 %v403
    %682 = vmatprep.subr.mxu0 %v399
    %683 = vmatpush2.msra.mxu0 %v398
    %684 = vmatprep.subr.mxu0 %v394
    %685 = vmatpush2.msra.mxu0 %v393
    %686 = vmatprep.subr.mxu0 %v389
    %687 = vmatpush2.msra.mxu0 %v388
    %688 = vmatprep.subr.mxu0 %v384
    %689 = vmatpush2.msra.mxu0 %v383
    %690 = vmatprep.subr.mxu0 %v379
    %691 = vmatpush2.msra.mxu0 %v378
    %692 = vmatprep.subr.mxu0 %v374
    %693 = vmatpush2.msra.mxu0 %v373
    %694 = vmatprep.mubr.f32.mxu0 %v131
    %695 = vmatmul.mubr.f32.gmra.mxu0 %v130
    %v696 = vpop.f32.mrf.mxu0
    %v697 = vadd.f32 %v626, %v696
    %v698 = vpop.f32.mrf.mxu0
    %v699 = vadd.f32 %v628, %v698
    %700 = vdwg.mxu0
    %701 = vmatprep.subr.mxu0 %v529
    %702 = vmatpush1.msra.mxu0 %v528
    %703 = vmatprep.subr.mxu0 %v524
    %704 = vmatpush1.msra.mxu0 %v523
    %705 = vmatprep.subr.mxu0 %v519
    %706 = vmatpush1.msra.mxu0 %v518
    %707 = vmatprep.subr.mxu0 %v514
    %708 = vmatpush1.msra.mxu0 %v513
    %709 = vmatprep.subr.mxu0 %v509
    %710 = vmatpush1.msra.mxu0 %v508
    %711 = vmatprep.subr.mxu0 %v504
    %712 = vmatpush1.msra.mxu0 %v503
    %713 = vmatprep.subr.mxu0 %v499
    %714 = vmatpush1.msra.mxu0 %v498
    %715 = vmatprep.subr.mxu0 %v494
    %716 = vmatpush1.msra.mxu0 %v493
    %717 = vmatprep.subr.mxu0 %v489
    %718 = vmatpush1.msra.mxu0 %v488
    %719 = vmatprep.subr.mxu0 %v484
    %720 = vmatpush1.msra.mxu0 %v483
    %721 = vmatprep.subr.mxu0 %v479
    %722 = vmatpush1.msra.mxu0 %v478
    %723 = vmatprep.subr.mxu0 %v474
    %724 = vmatpush1.msra.mxu0 %v473
    %725 = vmatprep.subr.mxu0 %v469
    %726 = vmatpush1.msra.mxu0 %v468
    %727 = vmatprep.subr.mxu0 %v464
    %728 = vmatpush1.msra.mxu0 %v463
    %729 = vmatprep.subr.mxu0 %v459
    %730 = vmatpush1.msra.mxu0 %v458
    %731 = vmatprep.subr.mxu0 %v454
    %732 = vmatpush1.msra.mxu0 %v453
    %733 = vmatprep.subr.mxu0 0.0
    %734 = vmatpush2.msra.mxu0 0.0
    %735 = vmatprep.subr.mxu0 0.0
    %736 = vmatpush2.msra.mxu0 0.0
    %737 = vmatprep.subr.mxu0 0.0
    %738 = vmatpush2.msra.mxu0 0.0
    %739 = vmatprep.subr.mxu0 0.0
    %740 = vmatpush2.msra.mxu0 0.0
    %741 = vmatprep.subr.mxu0 0.0
    %742 = vmatpush2.msra.mxu0 0.0
    %743 = vmatprep.subr.mxu0 0.0
    %744 = vmatpush2.msra.mxu0 0.0
    %745 = vmatprep.subr.mxu0 0.0
    %746 = vmatpush2.msra.mxu0 0.0
    %747 = vmatprep.subr.mxu0 0.0
    %748 = vmatpush2.msra.mxu0 0.0
    %749 = vmatprep.subr.mxu0 0.0
    %750 = vmatpush2.msra.mxu0 0.0
    %751 = vmatprep.subr.mxu0 0.0
    %752 = vmatpush2.msra.mxu0 0.0
    %753 = vmatprep.subr.mxu0 0.0
    %754 = vmatpush2.msra.mxu0 0.0
    %755 = vmatprep.subr.mxu0 0.0
    %756 = vmatpush2.msra.mxu0 0.0
    %757 = vmatprep.subr.mxu0 0.0
    %758 = vmatpush2.msra.mxu0 0.0
    %759 = vmatprep.subr.mxu0 0.0
    %760 = vmatpush2.msra.mxu0 0.0
    %761 = vmatprep.subr.mxu0 0.0
    %762 = vmatpush2.msra.mxu0 0.0
    %763 = vmatprep.subr.mxu0 0.0
    %764 = vmatpush2.msra.mxu0 0.0
    %765 = vmatprep.mubr.f32.mxu0 0.0
    %766 = vmatmul.mubr.f32.gmra.mxu0 %v132
    %v767 = vpop.f32.mrf.mxu0
    %v768 = vadd.f32 %v697, %v767
    %v769 = vpop.f32.mrf.mxu0
    %v770 = vadd.f32 %v699, %v769
    %771 = vdwg.mxu0
    %772 = vmatprep.subr.mxu0 %v211
    %773 = vmatpush1.msra.mxu0 %v210
    %774 = vmatprep.subr.mxu0 %v206
    %775 = vmatpush1.msra.mxu0 %v205
    %776 = vmatprep.subr.mxu0 %v201
    %777 = vmatpush1.msra.mxu0 %v200
    %778 = vmatprep.subr.mxu0 %v196
    %779 = vmatpush1.msra.mxu0 %v195
    %780 = vmatprep.subr.mxu0 %v191
    %781 = vmatpush1.msra.mxu0 %v190
    %782 = vmatprep.subr.mxu0 %v186
    %783 = vmatpush1.msra.mxu0 %v185
    %784 = vmatprep.subr.mxu0 %v181
    %785 = vmatpush1.msra.mxu0 %v180
    %786 = vmatprep.subr.mxu0 %v176
    %787 = vmatpush1.msra.mxu0 %v175
    %788 = vmatprep.subr.mxu0 %v171
    %789 = vmatpush1.msra.mxu0 %v170
    %790 = vmatprep.subr.mxu0 %v166
    %791 = vmatpush1.msra.mxu0 %v165
    %792 = vmatprep.subr.mxu0 %v161
    %793 = vmatpush1.msra.mxu0 %v160
    %794 = vmatprep.subr.mxu0 %v156
    %795 = vmatpush1.msra.mxu0 %v155
    %796 = vmatprep.subr.mxu0 %v151
    %797 = vmatpush1.msra.mxu0 %v150
    %798 = vmatprep.subr.mxu0 %v146
    %799 = vmatpush1.msra.mxu0 %v145
    %800 = vmatprep.subr.mxu0 %v141
    %801 = vmatpush1.msra.mxu0 %v140
    %802 = vmatprep.subr.mxu0 %v136
    %803 = vmatpush1.msra.mxu0 %v135
    %804 = vmatprep.subr.mxu0 %v291
    %805 = vmatpush2.msra.mxu0 %v290
    %806 = vmatprep.subr.mxu0 %v286
    %807 = vmatpush2.msra.mxu0 %v285
    %808 = vmatprep.subr.mxu0 %v281
    %809 = vmatpush2.msra.mxu0 %v280
    %810 = vmatprep.subr.mxu0 %v276
    %811 = vmatpush2.msra.mxu0 %v275
    %812 = vmatprep.subr.mxu0 %v271
    %813 = vmatpush2.msra.mxu0 %v270
    %814 = vmatprep.subr.mxu0 %v266
    %815 = vmatpush2.msra.mxu0 %v265
    %816 = vmatprep.subr.mxu0 %v261
    %817 = vmatpush2.msra.mxu0 %v260
    %818 = vmatprep.subr.mxu0 %v256
    %819 = vmatpush2.msra.mxu0 %v255
    %820 = vmatprep.subr.mxu0 %v251
    %821 = vmatpush2.msra.mxu0 %v250
    %822 = vmatprep.subr.mxu0 %v246
    %823 = vmatpush2.msra.mxu0 %v245
    %824 = vmatprep.subr.mxu0 %v241
    %825 = vmatpush2.msra.mxu0 %v240
    %826 = vmatprep.subr.mxu0 %v236
    %827 = vmatpush2.msra.mxu0 %v235
    %828 = vmatprep.subr.mxu0 %v231
    %829 = vmatpush2.msra.mxu0 %v230
    %830 = vmatprep.subr.mxu0 %v226
    %831 = vmatpush2.msra.mxu0 %v225
    %832 = vmatprep.subr.mxu0 %v221
    %833 = vmatpush2.msra.mxu0 %v220
    %834 = vmatprep.subr.mxu0 %v216
    %835 = vmatpush2.msra.mxu0 %v215
    %836 = vmatprep.mubr.f32.mxu0 %v129
    %837 = vmatmul.mubr.f32.gmra.mxu0 %v128
    %v838 = vpop.f32.mrf.mxu0
    %v839 = vadd.f32 %v545, %v838
    %v840 = vpop.f32.mrf.mxu0
    %v841 = vadd.f32 %v549, %v840
    %842 = vdwg.mxu0
    %843 = vmatprep.subr.mxu0 %v371
    %844 = vmatpush1.msra.mxu0 %v370
    %845 = vmatprep.subr.mxu0 %v366
    %846 = vmatpush1.msra.mxu0 %v365
    %847 = vmatprep.subr.mxu0 %v361
    %848 = vmatpush1.msra.mxu0 %v360
    %849 = vmatprep.subr.mxu0 %v356
    %850 = vmatpush1.msra.mxu0 %v355
    %851 = vmatprep.subr.mxu0 %v351
    %852 = vmatpush1.msra.mxu0 %v350
    %853 = vmatprep.subr.mxu0 %v346
    %854 = vmatpush1.msra.mxu0 %v345
    %855 = vmatprep.subr.mxu0 %v341
    %856 = vmatpush1.msra.mxu0 %v340
    %857 = vmatprep.subr.mxu0 %v336
    %858 = vmatpush1.msra.mxu0 %v335
    %859 = vmatprep.subr.mxu0 %v331
    %860 = vmatpush1.msra.mxu0 %v330
    %861 = vmatprep.subr.mxu0 %v326
    %862 = vmatpush1.msra.mxu0 %v325
    %863 = vmatprep.subr.mxu0 %v321
    %864 = vmatpush1.msra.mxu0 %v320
    %865 = vmatprep.subr.mxu0 %v316
    %866 = vmatpush1.msra.mxu0 %v315
    %867 = vmatprep.subr.mxu0 %v311
    %868 = vmatpush1.msra.mxu0 %v310
    %869 = vmatprep.subr.mxu0 %v306
    %870 = vmatpush1.msra.mxu0 %v305
    %871 = vmatprep.subr.mxu0 %v301
    %872 = vmatpush1.msra.mxu0 %v300
    %873 = vmatprep.subr.mxu0 %v296
    %874 = vmatpush1.msra.mxu0 %v295
    %875 = vmatprep.subr.mxu0 %v451
    %876 = vmatpush2.msra.mxu0 %v450
    %877 = vmatprep.subr.mxu0 %v446
    %878 = vmatpush2.msra.mxu0 %v445
    %879 = vmatprep.subr.mxu0 %v441
    %880 = vmatpush2.msra.mxu0 %v440
    %881 = vmatprep.subr.mxu0 %v436
    %882 = vmatpush2.msra.mxu0 %v435
    %883 = vmatprep.subr.mxu0 %v431
    %884 = vmatpush2.msra.mxu0 %v430
    %885 = vmatprep.subr.mxu0 %v426
    %886 = vmatpush2.msra.mxu0 %v425
    %887 = vmatprep.subr.mxu0 %v421
    %888 = vmatpush2.msra.mxu0 %v420
    %889 = vmatprep.subr.mxu0 %v416
    %890 = vmatpush2.msra.mxu0 %v415
    %891 = vmatprep.subr.mxu0 %v411
    %892 = vmatpush2.msra.mxu0 %v410
    %893 = vmatprep.subr.mxu0 %v406
    %894 = vmatpush2.msra.mxu0 %v405
    %895 = vmatprep.subr.mxu0 %v401
    %896 = vmatpush2.msra.mxu0 %v400
    %897 = vmatprep.subr.mxu0 %v396
    %898 = vmatpush2.msra.mxu0 %v395
    %899 = vmatprep.subr.mxu0 %v391
    %900 = vmatpush2.msra.mxu0 %v390
    %901 = vmatprep.subr.mxu0 %v386
    %902 = vmatpush2.msra.mxu0 %v385
    %903 = vmatprep.subr.mxu0 %v381
    %904 = vmatpush2.msra.mxu0 %v380
    %905 = vmatprep.subr.mxu0 %v376
    %906 = vmatpush2.msra.mxu0 %v375
    %907 = vmatprep.mubr.f32.mxu0 %v131
    %908 = vmatmul.mubr.f32.gmra.mxu0 %v130
    %v909 = vpop.f32.mrf.mxu0
    %v910 = vadd.f32 %v839, %v909
    %v911 = vpop.f32.mrf.mxu0
    %v912 = vadd.f32 %v841, %v911
    %913 = vdwg.mxu0
    %914 = vmatprep.subr.mxu0 %v531
    %915 = vmatpush1.msra.mxu0 %v530
    %916 = vmatprep.subr.mxu0 %v526
    %917 = vmatpush1.msra.mxu0 %v525
    %918 = vmatprep.subr.mxu0 %v521
    %919 = vmatpush1.msra.mxu0 %v520
    %920 = vmatprep.subr.mxu0 %v516
    %921 = vmatpush1.msra.mxu0 %v515
    %922 = vmatprep.subr.mxu0 %v511
    %923 = vmatpush1.msra.mxu0 %v510
    %924 = vmatprep.subr.mxu0 %v506
    %925 = vmatpush1.msra.mxu0 %v505
    %926 = vmatprep.subr.mxu0 %v501
    %927 = vmatpush1.msra.mxu0 %v500
    %928 = vmatprep.subr.mxu0 %v496
    %929 = vmatpush1.msra.mxu0 %v495
    %930 = vmatprep.subr.mxu0 %v491
    %931 = vmatpush1.msra.mxu0 %v490
    %932 = vmatprep.subr.mxu0 %v486
    %933 = vmatpush1.msra.mxu0 %v485
    %934 = vmatprep.subr.mxu0 %v481
    %935 = vmatpush1.msra.mxu0 %v480
    %936 = vmatprep.subr.mxu0 %v476
    %937 = vmatpush1.msra.mxu0 %v475
    %938 = vmatprep.subr.mxu0 %v471
    %939 = vmatpush1.msra.mxu0 %v470
    %940 = vmatprep.subr.mxu0 %v466
    %941 = vmatpush1.msra.mxu0 %v465
    %942 = vmatprep.subr.mxu0 %v461
    %943 = vmatpush1.msra.mxu0 %v460
    %944 = vmatprep.subr.mxu0 %v456
    %945 = vmatpush1.msra.mxu0 %v455
    %946 = vmatprep.subr.mxu0 0.0
    %947 = vmatpush2.msra.mxu0 0.0
    %948 = vmatprep.subr.mxu0 0.0
    %949 = vmatpush2.msra.mxu0 0.0
    %950 = vmatprep.subr.mxu0 0.0
    %951 = vmatpush2.msra.mxu0 0.0
    %952 = vmatprep.subr.mxu0 0.0
    %953 = vmatpush2.msra.mxu0 0.0
    %954 = vmatprep.subr.mxu0 0.0
    %955 = vmatpush2.msra.mxu0 0.0
    %956 = vmatprep.subr.mxu0 0.0
    %957 = vmatpush2.msra.mxu0 0.0
    %958 = vmatprep.subr.mxu0 0.0
    %959 = vmatpush2.msra.mxu0 0.0
    %960 = vmatprep.subr.mxu0 0.0
    %961 = vmatpush2.msra.mxu0 0.0
    %962 = vmatprep.subr.mxu0 0.0
    %963 = vmatpush2.msra.mxu0 0.0
    %964 = vmatprep.subr.mxu0 0.0
    %965 = vmatpush2.msra.mxu0 0.0
    %966 = vmatprep.subr.mxu0 0.0
    %967 = vmatpush2.msra.mxu0 0.0
    %968 = vmatprep.subr.mxu0 0.0
    %969 = vmatpush2.msra.mxu0 0.0
    %970 = vmatprep.subr.mxu0 0.0
    %971 = vmatpush2.msra.mxu0 0.0
    %972 = vmatprep.subr.mxu0 0.0
    %973 = vmatpush2.msra.mxu0 0.0
    %974 = vmatprep.subr.mxu0 0.0
    %975 = vmatpush2.msra.mxu0 0.0
    %976 = vmatprep.subr.mxu0 0.0
    %977 = vmatpush2.msra.mxu0 0.0
    %978 = vmatprep.mubr.f32.mxu0 0.0
    %979 = vmatmul.mubr.f32.gmra.mxu0 %v132
    %v980 = vpop.f32.mrf.mxu0
    %v981 = vadd.f32 %v910, %v980
    %v982 = vpop.f32.mrf.mxu0
    %v983 = vadd.f32 %v912, %v982
    %984 = vdwg.mxu0
    %985 = vmatprep.subr.mxu0 0.0
    %986 = vmatpush1.msra.mxu0 %v212
    %987 = vmatprep.subr.mxu0 0.0
    %988 = vmatpush1.msra.mxu0 %v207
    %989 = vmatprep.subr.mxu0 0.0
    %990 = vmatpush1.msra.mxu0 %v202
    %991 = vmatprep.subr.mxu0 0.0
    %992 = vmatpush1.msra.mxu0 %v197
    %993 = vmatprep.subr.mxu0 0.0
    %994 = vmatpush1.msra.mxu0 %v192
    %995 = vmatprep.subr.mxu0 0.0
    %996 = vmatpush1.msra.mxu0 %v187
    %997 = vmatprep.subr.mxu0 0.0
    %998 = vmatpush1.msra.mxu0 %v182
    %999 = vmatprep.subr.mxu0 0.0
    %1000 = vmatpush1.msra.mxu0 %v177
    %1001 = vmatprep.subr.mxu0 0.0
    %1002 = vmatpush1.msra.mxu0 %v172
    %1003 = vmatprep.subr.mxu0 0.0
    %1004 = vmatpush1.msra.mxu0 %v167
    %1005 = vmatprep.subr.mxu0 0.0
    %1006 = vmatpush1.msra.mxu0 %v162
    %1007 = vmatprep.subr.mxu0 0.0
    %1008 = vmatpush1.msra.mxu0 %v157
    %1009 = vmatprep.subr.mxu0 0.0
    %1010 = vmatpush1.msra.mxu0 %v152
    %1011 = vmatprep.subr.mxu0 0.0
    %1012 = vmatpush1.msra.mxu0 %v147
    %1013 = vmatprep.subr.mxu0 0.0
    %1014 = vmatpush1.msra.mxu0 %v142
    %1015 = vmatprep.subr.mxu0 0.0
    %1016 = vmatpush1.msra.mxu0 %v137
    %1017 = vmatprep.subr.mxu0 0.0
    %1018 = vmatpush2.msra.mxu0 %v292
    %1019 = vmatprep.subr.mxu0 0.0
    %1020 = vmatpush2.msra.mxu0 %v287
    %1021 = vmatprep.subr.mxu0 0.0
    %1022 = vmatpush2.msra.mxu0 %v282
    %1023 = vmatprep.subr.mxu0 0.0
    %1024 = vmatpush2.msra.mxu0 %v277
    %1025 = vmatprep.subr.mxu0 0.0
    %1026 = vmatpush2.msra.mxu0 %v272
    %1027 = vmatprep.subr.mxu0 0.0
    %1028 = vmatpush2.msra.mxu0 %v267
    %1029 = vmatprep.subr.mxu0 0.0
    %1030 = vmatpush2.msra.mxu0 %v262
    %1031 = vmatprep.subr.mxu0 0.0
    %1032 = vmatpush2.msra.mxu0 %v257
    %1033 = vmatprep.subr.mxu0 0.0
    %1034 = vmatpush2.msra.mxu0 %v252
    %1035 = vmatprep.subr.mxu0 0.0
    %1036 = vmatpush2.msra.mxu0 %v247
    %1037 = vmatprep.subr.mxu0 0.0
    %1038 = vmatpush2.msra.mxu0 %v242
    %1039 = vmatprep.subr.mxu0 0.0
    %1040 = vmatpush2.msra.mxu0 %v237
    %1041 = vmatprep.subr.mxu0 0.0
    %1042 = vmatpush2.msra.mxu0 %v232
    %1043 = vmatprep.subr.mxu0 0.0
    %1044 = vmatpush2.msra.mxu0 %v227
    %1045 = vmatprep.subr.mxu0 0.0
    %1046 = vmatpush2.msra.mxu0 %v222
    %1047 = vmatprep.subr.mxu0 0.0
    %1048 = vmatpush2.msra.mxu0 %v217
    %1049 = vmatprep.mubr.f32.mxu0 %v129
    %1050 = vmatmul.mubr.f32.gmra.mxu0 %v128
    %v1051 = vpop.f32.mrf.mxu0
    %v1052 = vadd.f32 %v553, %v1051
    %v1053 = vpop.f32.mrf.mxu0
    %1054 = vdwg.mxu0
    %1055 = vmatprep.subr.mxu0 0.0
    %1056 = vmatpush1.msra.mxu0 %v372
    %1057 = vmatprep.subr.mxu0 0.0
    %1058 = vmatpush1.msra.mxu0 %v367
    %1059 = vmatprep.subr.mxu0 0.0
    %1060 = vmatpush1.msra.mxu0 %v362
    %1061 = vmatprep.subr.mxu0 0.0
    %1062 = vmatpush1.msra.mxu0 %v357
    %1063 = vmatprep.subr.mxu0 0.0
    %1064 = vmatpush1.msra.mxu0 %v352
    %1065 = vmatprep.subr.mxu0 0.0
    %1066 = vmatpush1.msra.mxu0 %v347
    %1067 = vmatprep.subr.mxu0 0.0
    %1068 = vmatpush1.msra.mxu0 %v342
    %1069 = vmatprep.subr.mxu0 0.0
    %1070 = vmatpush1.msra.mxu0 %v337
    %1071 = vmatprep.subr.mxu0 0.0
    %1072 = vmatpush1.msra.mxu0 %v332
    %1073 = vmatprep.subr.mxu0 0.0
    %1074 = vmatpush1.msra.mxu0 %v327
    %1075 = vmatprep.subr.mxu0 0.0
    %1076 = vmatpush1.msra.mxu0 %v322
    %1077 = vmatprep.subr.mxu0 0.0
    %1078 = vmatpush1.msra.mxu0 %v317
    %1079 = vmatprep.subr.mxu0 0.0
    %1080 = vmatpush1.msra.mxu0 %v312
    %1081 = vmatprep.subr.mxu0 0.0
    %1082 = vmatpush1.msra.mxu0 %v307
    %1083 = vmatprep.subr.mxu0 0.0
    %1084 = vmatpush1.msra.mxu0 %v302
    %1085 = vmatprep.subr.mxu0 0.0
    %1086 = vmatpush1.msra.mxu0 %v297
    %1087 = vmatprep.subr.mxu0 0.0
    %1088 = vmatpush2.msra.mxu0 %v452
    %1089 = vmatprep.subr.mxu0 0.0
    %1090 = vmatpush2.msra.mxu0 %v447
    %1091 = vmatprep.subr.mxu0 0.0
    %1092 = vmatpush2.msra.mxu0 %v442
    %1093 = vmatprep.subr.mxu0 0.0
    %1094 = vmatpush2.msra.mxu0 %v437
    %1095 = vmatprep.subr.mxu0 0.0
    %1096 = vmatpush2.msra.mxu0 %v432
    %1097 = vmatprep.subr.mxu0 0.0
    %1098 = vmatpush2.msra.mxu0 %v427
    %1099 = vmatprep.subr.mxu0 0.0
    %1100 = vmatpush2.msra.mxu0 %v422
    %1101 = vmatprep.subr.mxu0 0.0
    %1102 = vmatpush2.msra.mxu0 %v417
    %1103 = vmatprep.subr.mxu0 0.0
    %1104 = vmatpush2.msra.mxu0 %v412
    %1105 = vmatprep.subr.mxu0 0.0
    %1106 = vmatpush2.msra.mxu0 %v407
    %1107 = vmatprep.subr.mxu0 0.0
    %1108 = vmatpush2.msra.mxu0 %v402
    %1109 = vmatprep.subr.mxu0 0.0
    %1110 = vmatpush2.msra.mxu0 %v397
    %1111 = vmatprep.subr.mxu0 0.0
    %1112 = vmatpush2.msra.mxu0 %v392
    %1113 = vmatprep.subr.mxu0 0.0
    %1114 = vmatpush2.msra.mxu0 %v387
    %1115 = vmatprep.subr.mxu0 0.0
    %1116 = vmatpush2.msra.mxu0 %v382
    %1117 = vmatprep.subr.mxu0 0.0
    %1118 = vmatpush2.msra.mxu0 %v377
    %1119 = vmatprep.mubr.f32.mxu0 %v131
    %1120 = vmatmul.mubr.f32.gmra.mxu0 %v130
    %v1121 = vpop.f32.mrf.mxu0
    %v1122 = vadd.f32 %v1052, %v1121
    %v1123 = vpop.f32.mrf.mxu0
    %1124 = vdwg.mxu0
    %1125 = vmatprep.subr.mxu0 0.0
    %1126 = vmatpush1.msra.mxu0 %v532
    %1127 = vmatprep.subr.mxu0 0.0
    %1128 = vmatpush1.msra.mxu0 %v527
    %1129 = vmatprep.subr.mxu0 0.0
    %1130 = vmatpush1.msra.mxu0 %v522
    %1131 = vmatprep.subr.mxu0 0.0
    %1132 = vmatpush1.msra.mxu0 %v517
    %1133 = vmatprep.subr.mxu0 0.0
    %1134 = vmatpush1.msra.mxu0 %v512
    %1135 = vmatprep.subr.mxu0 0.0
    %1136 = vmatpush1.msra.mxu0 %v507
    %1137 = vmatprep.subr.mxu0 0.0
    %1138 = vmatpush1.msra.mxu0 %v502
    %1139 = vmatprep.subr.mxu0 0.0
    %1140 = vmatpush1.msra.mxu0 %v497
    %1141 = vmatprep.subr.mxu0 0.0
    %1142 = vmatpush1.msra.mxu0 %v492
    %1143 = vmatprep.subr.mxu0 0.0
    %1144 = vmatpush1.msra.mxu0 %v487
    %1145 = vmatprep.subr.mxu0 0.0
    %1146 = vmatpush1.msra.mxu0 %v482
    %1147 = vmatprep.subr.mxu0 0.0
    %1148 = vmatpush1.msra.mxu0 %v477
    %1149 = vmatprep.subr.mxu0 0.0
    %1150 = vmatpush1.msra.mxu0 %v472
    %1151 = vmatprep.subr.mxu0 0.0
    %1152 = vmatpush1.msra.mxu0 %v467
    %1153 = vmatprep.subr.mxu0 0.0
    %1154 = vmatpush1.msra.mxu0 %v462
    %1155 = vmatprep.subr.mxu0 0.0
    %1156 = vmatpush1.msra.mxu0 %v457
    %1157 = vmatprep.subr.mxu0 0.0
    %1158 = vmatpush2.msra.mxu0 0.0
    %1159 = vmatprep.subr.mxu0 0.0
    %1160 = vmatpush2.msra.mxu0 0.0
    %1161 = vmatprep.subr.mxu0 0.0
    %1162 = vmatpush2.msra.mxu0 0.0
    %1163 = vmatprep.subr.mxu0 0.0
    %1164 = vmatpush2.msra.mxu0 0.0
    %1165 = vmatprep.subr.mxu0 0.0
    %1166 = vmatpush2.msra.mxu0 0.0
    %1167 = vmatprep.subr.mxu0 0.0
    %1168 = vmatpush2.msra.mxu0 0.0
    %1169 = vmatprep.subr.mxu0 0.0
    %1170 = vmatpush2.msra.mxu0 0.0
    %1171 = vmatprep.subr.mxu0 0.0
    %1172 = vmatpush2.msra.mxu0 0.0
    %1173 = vmatprep.subr.mxu0 0.0
    %1174 = vmatpush2.msra.mxu0 0.0
    %1175 = vmatprep.subr.mxu0 0.0
    %1176 = vmatpush2.msra.mxu0 0.0
    %1177 = vmatprep.subr.mxu0 0.0
    %1178 = vmatpush2.msra.mxu0 0.0
    %1179 = vmatprep.subr.mxu0 0.0
    %1180 = vmatpush2.msra.mxu0 0.0
    %1181 = vmatprep.subr.mxu0 0.0
    %1182 = vmatpush2.msra.mxu0 0.0
    %1183 = vmatprep.subr.mxu0 0.0
    %1184 = vmatpush2.msra.mxu0 0.0
    %1185 = vmatprep.subr.mxu0 0.0
    %1186 = vmatpush2.msra.mxu0 0.0
    %1187 = vmatprep.subr.mxu0 0.0
    %1188 = vmatpush2.msra.mxu0 0.0
    %1189 = vmatprep.mubr.f32.mxu0 0.0
    %1190 = vmatmul.mubr.f32.gmra.mxu0 %v132
    %v1191 = vpop.f32.mrf.mxu0
    %v1192 = vadd.f32 %v1122, %v1191
    %v1193 = vpop.f32.mrf.mxu0
    %1194 = vdwg.mxu0
    %v1195 = vmax.f32 %v768, 0.0
    %v1196 = vmax.f32 %v770, 0.0
    %v1197 = vmax.f32 %v981, 0.0
    %v1198 = vmax.f32 %v983, 0.0
    %v1199 = vmax.f32 %v1192, 0.0
    %s1200 = scalar_lea.vmem [#allocation2], 3200
    %v1201 = vld [vmem:[%s1200] sm:$0xff]
    %v1202 = vld [vmem:[%s1200 + $0x8] sm:$0xff]
    %v1203 = vld [vmem:[%s1200 + $0x10] sm:$0xff]
    %v1204 = vld [vmem:[%s1200 + $0x18] sm:$0xff]
    %v1205 = vld [vmem:[%s1200 + $0x20] sm:$0xff]
    %v1206 = vld [vmem:[%s1200 + $0x28] sm:$0xff]
    %v1207 = vld [vmem:[%s1200 + $0x30] sm:$0xff]
    %v1208 = vld [vmem:[%s1200 + $0x38] sm:$0xff]
    %v1209 = vld [vmem:[%s1200 + $0x40] sm:$0xff]
    %v1210 = vld [vmem:[%s1200 + $0x48] sm:$0xff]
    %v1211 = vld [vmem:[%s1200 + $0x50] sm:$0xff]
    %v1212 = vld [vmem:[%s1200 + $0x58] sm:$0xff]
    %v1213 = vld [vmem:[%s1200 + $0x60] sm:$0xff]
    %v1214 = vld [vmem:[%s1200 + $0x68] sm:$0xff]
    %v1215 = vld [vmem:[%s1200 + $0x70] sm:$0xff]
    %v1216 = vld [vmem:[%s1200 + $0x78] sm:$0xff]
    %v1217 = vld [vmem:[%s1200 + $0x80] sm:$0xff]
    %v1218 = vld [vmem:[%s1200 + $0x88] sm:$0xff]
    %v1219 = vld [vmem:[%s1200 + $0x90] sm:$0xff]
    %v1220 = vld [vmem:[%s1200 + $0x98] sm:$0xff]
    %v1221 = vld [vmem:[%s1200 + $0xa0] sm:$0xff]
    %v1222 = vld [vmem:[%s1200 + $0xa8] sm:$0xff]
    %v1223 = vld [vmem:[%s1200 + $0xb0] sm:$0xff]
    %v1224 = vld [vmem:[%s1200 + $0xb8] sm:$0xff]
    %v1225 = vld [vmem:[%s1200 + $0xc0] sm:$0xff]
    %v1226 = vld [vmem:[%s1200 + $0xc8] sm:$0xff]
    %v1227 = vld [vmem:[%s1200 + $0xd0] sm:$0xff]
    %v1228 = vld [vmem:[%s1200 + $0xd8] sm:$0xff]
    %v1229 = vld [vmem:[%s1200 + $0xe0] sm:$0xff]
    %v1230 = vld [vmem:[%s1200 + $0xe8] sm:$0xff]
    %v1231 = vld [vmem:[%s1200 + $0xf0] sm:$0xff]
    %v1232 = vld [vmem:[%s1200 + $0xf8] sm:$0xff]
    %v1233 = vld [vmem:[%s1200 + $0x100] sm:$0xff]
    %v1234 = vld [vmem:[%s1200 + $0x108] sm:$0xff]
    %v1235 = vld [vmem:[%s1200 + $0x110] sm:$0xff]
    %v1236 = vld [vmem:[%s1200 + $0x118] sm:$0xff]
    %v1237 = vld [vmem:[%s1200 + $0x120] sm:$0xff]
    %v1238 = vld [vmem:[%s1200 + $0x128] sm:$0xff]
    %v1239 = vld [vmem:[%s1200 + $0x130] sm:$0xff]
    %v1240 = vld [vmem:[%s1200 + $0x138] sm:$0xff]
    %v1241 = vld [vmem:[%s1200 + $0x140] sm:$0xff]
    %v1242 = vld [vmem:[%s1200 + $0x148] sm:$0xff]
    %v1243 = vld [vmem:[%s1200 + $0x150] sm:$0xff]
    %v1244 = vld [vmem:[%s1200 + $0x158] sm:$0xff]
    %v1245 = vld [vmem:[%s1200 + $0x160] sm:$0xff]
    %v1246 = vld [vmem:[%s1200 + $0x168] sm:$0xff]
    %v1247 = vld [vmem:[%s1200 + $0x170] sm:$0xff]
    %v1248 = vld [vmem:[%s1200 + $0x178] sm:$0xff]
    %v1249 = vld [vmem:[%s1200 + $0x180] sm:$0xff]
    %v1250 = vld [vmem:[%s1200 + $0x188] sm:$0xff]
    %v1251 = vld [vmem:[%s1200 + $0x190] sm:$0xff]
    %v1252 = vld [vmem:[%s1200 + $0x198] sm:$0xff]
    %v1253 = vld [vmem:[%s1200 + $0x1a0] sm:$0xff]
    %v1254 = vld [vmem:[%s1200 + $0x1a8] sm:$0xff]
    %v1255 = vld [vmem:[%s1200 + $0x1b0] sm:$0xff]
    %v1256 = vld [vmem:[%s1200 + $0x1b8] sm:$0xff]
    %v1257 = vld [vmem:[%s1200 + $0x1c0] sm:$0xff]
    %v1258 = vld [vmem:[%s1200 + $0x1c8] sm:$0xff]
    %v1259 = vld [vmem:[%s1200 + $0x1d0] sm:$0xff]
    %v1260 = vld [vmem:[%s1200 + $0x1d8] sm:$0xff]
    %v1261 = vld [vmem:[%s1200 + $0x1e0] sm:$0xff]
    %v1262 = vld [vmem:[%s1200 + $0x1e8] sm:$0xff]
    %v1263 = vld [vmem:[%s1200 + $0x1f0] sm:$0xff]
    %v1264 = vld [vmem:[%s1200 + $0x1f8] sm:$0xff]
    %v1265 = vld [vmem:[%s1200 + $0x200] sm:$0xff]
    %v1266 = vld [vmem:[%s1200 + $0x208] sm:$0xff]
    %v1267 = vld [vmem:[%s1200 + $0x210] sm:$0xff]
    %v1268 = vld [vmem:[%s1200 + $0x218] sm:$0xff]
    %v1269 = vld [vmem:[%s1200 + $0x220] sm:$0xff]
    %v1270 = vld [vmem:[%s1200 + $0x228] sm:$0xff]
    %v1271 = vld [vmem:[%s1200 + $0x230] sm:$0xff]
    %v1272 = vld [vmem:[%s1200 + $0x238] sm:$0xff]
    %v1273 = vld [vmem:[%s1200 + $0x240] sm:$0xff]
    %v1274 = vld [vmem:[%s1200 + $0x248] sm:$0xff]
    %v1275 = vld [vmem:[%s1200 + $0x250] sm:$0xff]
    %v1276 = vld [vmem:[%s1200 + $0x258] sm:$0xff]
    %v1277 = vld [vmem:[%s1200 + $0x260] sm:$0xff]
    %v1278 = vld [vmem:[%s1200 + $0x268] sm:$0xff]
    %v1279 = vld [vmem:[%s1200 + $0x270] sm:$0xff]
    %v1280 = vld [vmem:[%s1200 + $0x278] sm:$0xff]
    %v1281 = vld [vmem:[%s1200 + $0x280] sm:$0xff]
    %v1282 = vld [vmem:[%s1200 + $0x288] sm:$0xff]
    %v1283 = vld [vmem:[%s1200 + $0x290] sm:$0xff]
    %v1284 = vld [vmem:[%s1200 + $0x298] sm:$0xff]
    %v1285 = vld [vmem:[%s1200 + $0x2a0] sm:$0xff]
    %v1286 = vld [vmem:[%s1200 + $0x2a8] sm:$0xff]
    %v1287 = vld [vmem:[%s1200 + $0x2b0] sm:$0xff]
    %v1288 = vld [vmem:[%s1200 + $0x2b8] sm:$0xff]
    %v1289 = vld [vmem:[%s1200 + $0x2c0] sm:$0xff]
    %v1290 = vld [vmem:[%s1200 + $0x2c8] sm:$0xff]
    %v1291 = vld [vmem:[%s1200 + $0x2d0] sm:$0xff]
    %v1292 = vld [vmem:[%s1200 + $0x2d8] sm:$0xff]
    %v1293 = vld [vmem:[%s1200 + $0x2e0] sm:$0xff]
    %v1294 = vld [vmem:[%s1200 + $0x2e8] sm:$0xff]
    %v1295 = vld [vmem:[%s1200 + $0x2f0] sm:$0xff]
    %v1296 = vld [vmem:[%s1200 + $0x2f8] sm:$0xff]
    %v1297 = vld [vmem:[%s1200 + $0x300] sm:$0xff]
    %v1298 = vld [vmem:[%s1200 + $0x308] sm:$0xff]
    %v1299 = vld [vmem:[%s1200 + $0x310] sm:$0xff]
    %v1300 = vld [vmem:[%s1200 + $0x318] sm:$0xff]
    %v1301 = vld [vmem:[%s1200 + $0x320] sm:$0xff]
    %v1302 = vld [vmem:[%s1200 + $0x328] sm:$0xff]
    %v1303 = vld [vmem:[%s1200 + $0x330] sm:$0xff]
    %v1304 = vld [vmem:[%s1200 + $0x338] sm:$0xff]
    %v1305 = vld [vmem:[%s1200 + $0x340] sm:$0xff]
    %v1306 = vld [vmem:[%s1200 + $0x348] sm:$0xff]
    %v1307 = vld [vmem:[%s1200 + $0x350] sm:$0xff]
    %v1308 = vld [vmem:[%s1200 + $0x358] sm:$0xff]
    %v1309 = vld [vmem:[%s1200 + $0x360] sm:$0xff]
    %v1310 = vld [vmem:[%s1200 + $0x368] sm:$0xff]
    %v1311 = vld [vmem:[%s1200 + $0x370] sm:$0xff]
    %v1312 = vld [vmem:[%s1200 + $0x378] sm:$0xff]
    %v1313 = vld [vmem:[%s1200 + $0x380] sm:$0xff]
    %v1314 = vld [vmem:[%s1200 + $0x388] sm:$0xff]
    %v1315 = vld [vmem:[%s1200 + $0x390] sm:$0xff]
    %v1316 = vld [vmem:[%s1200 + $0x398] sm:$0xff]
    %v1317 = vld [vmem:[%s1200 + $0x3a0] sm:$0xff]
    %v1318 = vld [vmem:[%s1200 + $0x3a8] sm:$0xff]
    %v1319 = vld [vmem:[%s1200 + $0x3b0] sm:$0xff]
    %v1320 = vld [vmem:[%s1200 + $0x3b8] sm:$0xff]
    %v1321 = vld [vmem:[%s1200 + $0x3c0] sm:$0xff]
    %v1322 = vld [vmem:[%s1200 + $0x3c8] sm:$0xff]
    %v1323 = vld [vmem:[%s1200 + $0x3d0] sm:$0xff]
    %v1324 = vld [vmem:[%s1200 + $0x3d8] sm:$0xff]
    %v1325 = vld [vmem:[%s1200 + $0x3e0] sm:$0xff]
    %v1326 = vld [vmem:[%s1200 + $0x3e8] sm:$0xff]
    %v1327 = vld [vmem:[%s1200 + $0x3f0] sm:$0xff]
    %v1328 = vld [vmem:[%s1200 + $0x3f8] sm:$0xff]
    %v1329 = vld [vmem:[%s1200 + $0x400] sm:$0xff]
    %v1330 = vld [vmem:[%s1200 + $0x408] sm:$0xff]
    %v1331 = vld [vmem:[%s1200 + $0x410] sm:$0xff]
    %v1332 = vld [vmem:[%s1200 + $0x418] sm:$0xff]
    %v1333 = vld [vmem:[%s1200 + $0x420] sm:$0xff]
    %v1334 = vld [vmem:[%s1200 + $0x428] sm:$0xff]
    %v1335 = vld [vmem:[%s1200 + $0x430] sm:$0xff]
    %v1336 = vld [vmem:[%s1200 + $0x438] sm:$0xff]
    %v1337 = vld [vmem:[%s1200 + $0x440] sm:$0xff]
    %v1338 = vld [vmem:[%s1200 + $0x448] sm:$0xff]
    %v1339 = vld [vmem:[%s1200 + $0x450] sm:$0xff]
    %v1340 = vld [vmem:[%s1200 + $0x458] sm:$0xff]
    %v1341 = vld [vmem:[%s1200 + $0x460] sm:$0xff]
    %v1342 = vld [vmem:[%s1200 + $0x468] sm:$0xff]
    %v1343 = vld [vmem:[%s1200 + $0x470] sm:$0xff]
    %v1344 = vld [vmem:[%s1200 + $0x478] sm:$0xff]
    %v1345 = vld [vmem:[%s1200 + $0x480] sm:$0xff]
    %v1346 = vld [vmem:[%s1200 + $0x488] sm:$0xff]
    %v1347 = vld [vmem:[%s1200 + $0x490] sm:$0xff]
    %v1348 = vld [vmem:[%s1200 + $0x498] sm:$0xff]
    %v1349 = vld [vmem:[%s1200 + $0x4a0] sm:$0xff]
    %v1350 = vld [vmem:[%s1200 + $0x4a8] sm:$0xff]
    %v1351 = vld [vmem:[%s1200 + $0x4b0] sm:$0xff]
    %v1352 = vld [vmem:[%s1200 + $0x4b8] sm:$0xff]
    %v1353 = vld [vmem:[%s1200 + $0x4c0] sm:$0xff]
    %v1354 = vld [vmem:[%s1200 + $0x4c8] sm:$0xff]
    %v1355 = vld [vmem:[%s1200 + $0x4d0] sm:$0xff]
    %v1356 = vld [vmem:[%s1200 + $0x4d8] sm:$0xff]
    %v1357 = vld [vmem:[%s1200 + $0x4e0] sm:$0xff]
    %v1358 = vld [vmem:[%s1200 + $0x4e8] sm:$0xff]
    %v1359 = vld [vmem:[%s1200 + $0x4f0] sm:$0xff]
    %v1360 = vld [vmem:[%s1200 + $0x4f8] sm:$0xff]
    %v1361 = vld [vmem:[%s1200 + $0x500] sm:$0xff]
    %v1362 = vld [vmem:[%s1200 + $0x508] sm:$0xff]
    %v1363 = vld [vmem:[%s1200 + $0x510] sm:$0xff]
    %v1364 = vld [vmem:[%s1200 + $0x518] sm:$0xff]
    %v1365 = vld [vmem:[%s1200 + $0x520] sm:$0xff]
    %v1366 = vld [vmem:[%s1200 + $0x528] sm:$0xff]
    %v1367 = vld [vmem:[%s1200 + $0x530] sm:$0xff]
    %v1368 = vld [vmem:[%s1200 + $0x538] sm:$0xff]
    %v1369 = vld [vmem:[%s1200 + $0x540] sm:$0xff]
    %v1370 = vld [vmem:[%s1200 + $0x548] sm:$0xff]
    %v1371 = vld [vmem:[%s1200 + $0x550] sm:$0xff]
    %v1372 = vld [vmem:[%s1200 + $0x558] sm:$0xff]
    %v1373 = vld [vmem:[%s1200 + $0x560] sm:$0xff]
    %v1374 = vld [vmem:[%s1200 + $0x568] sm:$0xff]
    %v1375 = vld [vmem:[%s1200 + $0x570] sm:$0xff]
    %v1376 = vld [vmem:[%s1200 + $0x578] sm:$0xff]
    %v1377 = vld [vmem:[%s1200 + $0x580] sm:$0xff]
    %v1378 = vld [vmem:[%s1200 + $0x588] sm:$0xff]
    %v1379 = vld [vmem:[%s1200 + $0x590] sm:$0xff]
    %v1380 = vld [vmem:[%s1200 + $0x598] sm:$0xff]
    %v1381 = vld [vmem:[%s1200 + $0x5a0] sm:$0xff]
    %v1382 = vld [vmem:[%s1200 + $0x5a8] sm:$0xff]
    %v1383 = vld [vmem:[%s1200 + $0x5b0] sm:$0xff]
    %v1384 = vld [vmem:[%s1200 + $0x5b8] sm:$0xff]
    %v1385 = vld [vmem:[%s1200 + $0x5c0] sm:$0xff]
    %v1386 = vld [vmem:[%s1200 + $0x5c8] sm:$0xff]
    %v1387 = vld [vmem:[%s1200 + $0x5d0] sm:$0xff]
    %v1388 = vld [vmem:[%s1200 + $0x5d8] sm:$0xff]
    %v1389 = vld [vmem:[%s1200 + $0x5e0] sm:$0xff]
    %v1390 = vld [vmem:[%s1200 + $0x5e8] sm:$0xff]
    %v1391 = vld [vmem:[%s1200 + $0x5f0] sm:$0xff]
    %v1392 = vld [vmem:[%s1200 + $0x5f8] sm:$0xff]
    %v1393 = vld [vmem:[%s1200 + $0x600] sm:$0xff]
    %v1394 = vld [vmem:[%s1200 + $0x608] sm:$0xff]
    %v1395 = vld [vmem:[%s1200 + $0x610] sm:$0xff]
    %v1396 = vld [vmem:[%s1200 + $0x618] sm:$0xff]
    %v1397 = vld [vmem:[%s1200 + $0x620] sm:$0xff]
    %v1398 = vld [vmem:[%s1200 + $0x628] sm:$0xff]
    %v1399 = vld [vmem:[%s1200 + $0x630] sm:$0xff]
    %v1400 = vld [vmem:[%s1200 + $0x638] sm:$0xff]
    %v1401 = vld [vmem:[%s1200 + $0x640] sm:$0xff]
    %v1402 = vld [vmem:[%s1200 + $0x648] sm:$0xff]
    %v1403 = vld [vmem:[%s1200 + $0x650] sm:$0xff]
    %v1404 = vld [vmem:[%s1200 + $0x658] sm:$0xff]
    %v1405 = vld [vmem:[%s1200 + $0x660] sm:$0xff]
    %v1406 = vld [vmem:[%s1200 + $0x668] sm:$0xff]
    %v1407 = vld [vmem:[%s1200 + $0x670] sm:$0xff]
    %v1408 = vld [vmem:[%s1200 + $0x678] sm:$0xff]
    %v1409 = vld [vmem:[%s1200 + $0x680] sm:$0xff]
    %v1410 = vld [vmem:[%s1200 + $0x688] sm:$0xff]
    %v1411 = vld [vmem:[%s1200 + $0x690] sm:$0xff]
    %v1412 = vld [vmem:[%s1200 + $0x698] sm:$0xff]
    %v1413 = vld [vmem:[%s1200 + $0x6a0] sm:$0xff]
    %v1414 = vld [vmem:[%s1200 + $0x6a8] sm:$0xff]
    %v1415 = vld [vmem:[%s1200 + $0x6b0] sm:$0xff]
    %v1416 = vld [vmem:[%s1200 + $0x6b8] sm:$0xff]
    %v1417 = vld [vmem:[%s1200 + $0x6c0] sm:$0xff]
    %v1418 = vld [vmem:[%s1200 + $0x6c8] sm:$0xff]
    %v1419 = vld [vmem:[%s1200 + $0x6d0] sm:$0xff]
    %v1420 = vld [vmem:[%s1200 + $0x6d8] sm:$0xff]
    %v1421 = vld [vmem:[%s1200 + $0x6e0] sm:$0xff]
    %v1422 = vld [vmem:[%s1200 + $0x6e8] sm:$0xff]
    %v1423 = vld [vmem:[%s1200 + $0x6f0] sm:$0xff]
    %v1424 = vld [vmem:[%s1200 + $0x6f8] sm:$0xff]
    %v1425 = vld [vmem:[%s1200 + $0x700] sm:$0xff]
    %v1426 = vld [vmem:[%s1200 + $0x708] sm:$0xff]
    %v1427 = vld [vmem:[%s1200 + $0x710] sm:$0xff]
    %v1428 = vld [vmem:[%s1200 + $0x718] sm:$0xff]
    %v1429 = vld [vmem:[%s1200 + $0x720] sm:$0xff]
    %v1430 = vld [vmem:[%s1200 + $0x728] sm:$0xff]
    %v1431 = vld [vmem:[%s1200 + $0x730] sm:$0xff]
    %v1432 = vld [vmem:[%s1200 + $0x738] sm:$0xff]
    %v1433 = vld [vmem:[%s1200 + $0x740] sm:$0xff]
    %v1434 = vld [vmem:[%s1200 + $0x748] sm:$0xff]
    %v1435 = vld [vmem:[%s1200 + $0x750] sm:$0xff]
    %v1436 = vld [vmem:[%s1200 + $0x758] sm:$0xff]
    %v1437 = vld [vmem:[%s1200 + $0x760] sm:$0xff]
    %v1438 = vld [vmem:[%s1200 + $0x768] sm:$0xff]
    %v1439 = vld [vmem:[%s1200 + $0x770] sm:$0xff]
    %v1440 = vld [vmem:[%s1200 + $0x778] sm:$0xff]
    %v1441 = vld [vmem:[%s1200 + $0x780] sm:$0xff]
    %v1442 = vld [vmem:[%s1200 + $0x788] sm:$0xff]
    %v1443 = vld [vmem:[%s1200 + $0x790] sm:$0xff]
    %v1444 = vld [vmem:[%s1200 + $0x798] sm:$0xff]
    %v1445 = vld [vmem:[%s1200 + $0x7a0] sm:$0xff]
    %v1446 = vld [vmem:[%s1200 + $0x7a8] sm:$0xff]
    %v1447 = vld [vmem:[%s1200 + $0x7b0] sm:$0xff]
    %v1448 = vld [vmem:[%s1200 + $0x7b8] sm:$0xff]
    %v1449 = vld [vmem:[%s1200 + $0x7c0] sm:$0xff]
    %v1450 = vld [vmem:[%s1200 + $0x7c8] sm:$0xff]
    %v1451 = vld [vmem:[%s1200 + $0x7d0] sm:$0xff]
    %v1452 = vld [vmem:[%s1200 + $0x7d8] sm:$0xff]
    %v1453 = vld [vmem:[%s1200 + $0x7e0] sm:$0xff]
    %v1454 = vld [vmem:[%s1200 + $0x7e8] sm:$0xff]
    %v1455 = vld [vmem:[%s1200 + $0x7f0] sm:$0xff]
    %v1456 = vld [vmem:[%s1200 + $0x7f8] sm:$0xff]
    %v1457 = vld [vmem:[%s1200 + $0x800] sm:$0xff]
    %v1458 = vld [vmem:[%s1200 + $0x808] sm:$0xff]
    %v1459 = vld [vmem:[%s1200 + $0x810] sm:$0xff]
    %v1460 = vld [vmem:[%s1200 + $0x818] sm:$0xff]
    %v1461 = vld [vmem:[%s1200 + $0x820] sm:$0xff]
    %v1462 = vld [vmem:[%s1200 + $0x828] sm:$0xff]
    %v1463 = vld [vmem:[%s1200 + $0x830] sm:$0xff]
    %v1464 = vld [vmem:[%s1200 + $0x838] sm:$0xff]
    %v1465 = vld [vmem:[%s1200 + $0x840] sm:$0xff]
    %v1466 = vld [vmem:[%s1200 + $0x848] sm:$0xff]
    %v1467 = vld [vmem:[%s1200 + $0x850] sm:$0xff]
    %v1468 = vld [vmem:[%s1200 + $0x858] sm:$0xff]
    %v1469 = vld [vmem:[%s1200 + $0x860] sm:$0xff]
    %v1470 = vld [vmem:[%s1200 + $0x868] sm:$0xff]
    %v1471 = vld [vmem:[%s1200 + $0x870] sm:$0xff]
    %v1472 = vld [vmem:[%s1200 + $0x878] sm:$0xff]
    %v1473 = vld [vmem:[%s1200 + $0x880] sm:$0xff]
    %v1474 = vld [vmem:[%s1200 + $0x888] sm:$0xff]
    %v1475 = vld [vmem:[%s1200 + $0x890] sm:$0xff]
    %v1476 = vld [vmem:[%s1200 + $0x898] sm:$0xff]
    %v1477 = vld [vmem:[%s1200 + $0x8a0] sm:$0xff]
    %v1478 = vld [vmem:[%s1200 + $0x8a8] sm:$0xff]
    %v1479 = vld [vmem:[%s1200 + $0x8b0] sm:$0xff]
    %v1480 = vld [vmem:[%s1200 + $0x8b8] sm:$0xff]
    %v1481 = vld [vmem:[%s1200 + $0x8c0] sm:$0xff]
    %v1482 = vld [vmem:[%s1200 + $0x8c8] sm:$0xff]
    %v1483 = vld [vmem:[%s1200 + $0x8d0] sm:$0xff]
    %v1484 = vld [vmem:[%s1200 + $0x8d8] sm:$0xff]
    %v1485 = vld [vmem:[%s1200 + $0x8e0] sm:$0xff]
    %v1486 = vld [vmem:[%s1200 + $0x8e8] sm:$0xff]
    %v1487 = vld [vmem:[%s1200 + $0x8f0] sm:$0xff]
    %v1488 = vld [vmem:[%s1200 + $0x8f8] sm:$0xff]
    %v1489 = vld [vmem:[%s1200 + $0x900] sm:$0xff]
    %v1490 = vld [vmem:[%s1200 + $0x908] sm:$0xff]
    %v1491 = vld [vmem:[%s1200 + $0x910] sm:$0xff]
    %v1492 = vld [vmem:[%s1200 + $0x918] sm:$0xff]
    %v1493 = vld [vmem:[%s1200 + $0x920] sm:$0xff]
    %v1494 = vld [vmem:[%s1200 + $0x928] sm:$0xff]
    %v1495 = vld [vmem:[%s1200 + $0x930] sm:$0xff]
    %v1496 = vld [vmem:[%s1200 + $0x938] sm:$0xff]
    %v1497 = vld [vmem:[%s1200 + $0x940] sm:$0xff]
    %v1498 = vld [vmem:[%s1200 + $0x948] sm:$0xff]
    %v1499 = vld [vmem:[%s1200 + $0x950] sm:$0xff]
    %v1500 = vld [vmem:[%s1200 + $0x958] sm:$0xff]
    %v1501 = vld [vmem:[%s1200 + $0x960] sm:$0xff]
    %v1502 = vld [vmem:[%s1200 + $0x968] sm:$0xff]
    %v1503 = vld [vmem:[%s1200 + $0x970] sm:$0xff]
    %v1504 = vld [vmem:[%s1200 + $0x978] sm:$0xff]
    %v1505 = vld [vmem:[%s1200 + $0x980] sm:$0xff]
    %v1506 = vld [vmem:[%s1200 + $0x988] sm:$0xff]
    %v1507 = vld [vmem:[%s1200 + $0x990] sm:$0xff]
    %v1508 = vld [vmem:[%s1200 + $0x998] sm:$0xff]
    %v1509 = vld [vmem:[%s1200 + $0x9a0] sm:$0xff]
    %v1510 = vld [vmem:[%s1200 + $0x9a8] sm:$0xff]
    %v1511 = vld [vmem:[%s1200 + $0x9b0] sm:$0xff]
    %v1512 = vld [vmem:[%s1200 + $0x9b8] sm:$0xff]
    %v1513 = vld [vmem:[%s1200 + $0x9c0] sm:$0xff]
    %v1514 = vld [vmem:[%s1200 + $0x9c8] sm:$0xff]
    %v1515 = vld [vmem:[%s1200 + $0x9d0] sm:$0xff]
    %v1516 = vld [vmem:[%s1200 + $0x9d8] sm:$0xff]
    %v1517 = vld [vmem:[%s1200 + $0x9e0] sm:$0xff]
    %v1518 = vld [vmem:[%s1200 + $0x9e8] sm:$0xff]
    %v1519 = vld [vmem:[%s1200 + $0x9f0] sm:$0xff]
    %v1520 = vld [vmem:[%s1200 + $0x9f8] sm:$0xff]
    %v1521 = vld [vmem:[%s1200 + $0xa00] sm:$0xff]
    %v1522 = vld [vmem:[%s1200 + $0xa08] sm:$0xff]
    %v1523 = vld [vmem:[%s1200 + $0xa10] sm:$0xff]
    %v1524 = vld [vmem:[%s1200 + $0xa18] sm:$0xff]
    %v1525 = vld [vmem:[%s1200 + $0xa20] sm:$0xff]
    %v1526 = vld [vmem:[%s1200 + $0xa28] sm:$0xff]
    %v1527 = vld [vmem:[%s1200 + $0xa30] sm:$0xff]
    %v1528 = vld [vmem:[%s1200 + $0xa38] sm:$0xff]
    %v1529 = vld [vmem:[%s1200 + $0xa40] sm:$0xff]
    %v1530 = vld [vmem:[%s1200 + $0xa48] sm:$0xff]
    %v1531 = vld [vmem:[%s1200 + $0xa50] sm:$0xff]
    %v1532 = vld [vmem:[%s1200 + $0xa58] sm:$0xff]
    %v1533 = vld [vmem:[%s1200 + $0xa60] sm:$0xff]
    %v1534 = vld [vmem:[%s1200 + $0xa68] sm:$0xff]
    %v1535 = vld [vmem:[%s1200 + $0xa70] sm:$0xff]
    %v1536 = vld [vmem:[%s1200 + $0xa78] sm:$0xff]
    %v1537 = vld [vmem:[%s1200 + $0xa80] sm:$0xff]
    %v1538 = vld [vmem:[%s1200 + $0xa88] sm:$0xff]
    %v1539 = vld [vmem:[%s1200 + $0xa90] sm:$0xff]
    %v1540 = vld [vmem:[%s1200 + $0xa98] sm:$0xff]
    %v1541 = vld [vmem:[%s1200 + $0xaa0] sm:$0xff]
    %v1542 = vld [vmem:[%s1200 + $0xaa8] sm:$0xff]
    %v1543 = vld [vmem:[%s1200 + $0xab0] sm:$0xff]
    %v1544 = vld [vmem:[%s1200 + $0xab8] sm:$0xff]
    %v1545 = vld [vmem:[%s1200 + $0xac0] sm:$0xff]
    %v1546 = vld [vmem:[%s1200 + $0xac8] sm:$0xff]
    %v1547 = vld [vmem:[%s1200 + $0xad0] sm:$0xff]
    %v1548 = vld [vmem:[%s1200 + $0xad8] sm:$0xff]
    %v1549 = vld [vmem:[%s1200 + $0xae0] sm:$0xff]
    %v1550 = vld [vmem:[%s1200 + $0xae8] sm:$0xff]
    %v1551 = vld [vmem:[%s1200 + $0xaf0] sm:$0xff]
    %v1552 = vld [vmem:[%s1200 + $0xaf8] sm:$0xff]
    %v1553 = vld [vmem:[%s1200 + $0xb00] sm:$0xff]
    %v1554 = vld [vmem:[%s1200 + $0xb08] sm:$0xff]
    %v1555 = vld [vmem:[%s1200 + $0xb10] sm:$0xff]
    %v1556 = vld [vmem:[%s1200 + $0xb18] sm:$0xff]
    %v1557 = vld [vmem:[%s1200 + $0xb20] sm:$0xff]
    %v1558 = vld [vmem:[%s1200 + $0xb28] sm:$0xff]
    %v1559 = vld [vmem:[%s1200 + $0xb30] sm:$0xff]
    %v1560 = vld [vmem:[%s1200 + $0xb38] sm:$0xff]
    %v1561 = vld [vmem:[%s1200 + $0xb40] sm:$0xff]
    %v1562 = vld [vmem:[%s1200 + $0xb48] sm:$0xff]
    %v1563 = vld [vmem:[%s1200 + $0xb50] sm:$0xff]
    %v1564 = vld [vmem:[%s1200 + $0xb58] sm:$0xff]
    %v1565 = vld [vmem:[%s1200 + $0xb60] sm:$0xff]
    %v1566 = vld [vmem:[%s1200 + $0xb68] sm:$0xff]
    %v1567 = vld [vmem:[%s1200 + $0xb70] sm:$0xff]
    %v1568 = vld [vmem:[%s1200 + $0xb78] sm:$0xff]
    %v1569 = vld [vmem:[%s1200 + $0xb80] sm:$0xff]
    %v1570 = vld [vmem:[%s1200 + $0xb88] sm:$0xff]
    %v1571 = vld [vmem:[%s1200 + $0xb90] sm:$0xff]
    %v1572 = vld [vmem:[%s1200 + $0xb98] sm:$0xff]
    %v1573 = vld [vmem:[%s1200 + $0xba0] sm:$0xff]
    %v1574 = vld [vmem:[%s1200 + $0xba8] sm:$0xff]
    %v1575 = vld [vmem:[%s1200 + $0xbb0] sm:$0xff]
    %v1576 = vld [vmem:[%s1200 + $0xbb8] sm:$0xff]
    %v1577 = vld [vmem:[%s1200 + $0xbc0] sm:$0xff]
    %v1578 = vld [vmem:[%s1200 + $0xbc8] sm:$0xff]
    %v1579 = vld [vmem:[%s1200 + $0xbd0] sm:$0xff]
    %v1580 = vld [vmem:[%s1200 + $0xbd8] sm:$0xff]
    %v1581 = vld [vmem:[%s1200 + $0xbe0] sm:$0xff]
    %v1582 = vld [vmem:[%s1200 + $0xbe8] sm:$0xff]
    %v1583 = vld [vmem:[%s1200 + $0xbf0] sm:$0xff]
    %v1584 = vld [vmem:[%s1200 + $0xbf8] sm:$0xff]
    %v1585 = vld [vmem:[%s1200 + $0xc00] sm:$0xff]
    %v1586 = vld [vmem:[%s1200 + $0xc08] sm:$0xff]
    %v1587 = vld [vmem:[%s1200 + $0xc10] sm:$0xff]
    %v1588 = vld [vmem:[%s1200 + $0xc18] sm:$0xff]
    %v1589 = vld [vmem:[%s1200 + $0xc20] sm:$0xff]
    %v1590 = vld [vmem:[%s1200 + $0xc28] sm:$0xff]
    %v1591 = vld [vmem:[%s1200 + $0xc30] sm:$0xff]
    %v1592 = vld [vmem:[%s1200 + $0xc38] sm:$0xff]
    %v1593 = vld [vmem:[%s1200 + $0xc40] sm:$0xff]
    %v1594 = vld [vmem:[%s1200 + $0xc48] sm:$0xff]
    %v1595 = vld [vmem:[%s1200 + $0xc50] sm:$0xff]
    %v1596 = vld [vmem:[%s1200 + $0xc58] sm:$0xff]
    %v1597 = vld [vmem:[%s1200 + $0xc60] sm:$0xff]
    %v1598 = vld [vmem:[%s1200 + $0xc68] sm:$0xff]
    %v1599 = vld [vmem:[%s1200 + $0xc70] sm:$0xff]
    %v1600 = vld [vmem:[%s1200 + $0xc78] sm:$0xff]
    %v1602 = vlaneseq
    %v1603 = vshrl.u32 %v1602, 7
    %v1604 = vsub.s32 0, %v1603
    %v1605 = vrot.slane %v55, %v1604
    %v1606 = vlaneseq
    %v1607 = vshrl.u32 %v1606, 7
    %v1608 = vsub.s32 1, %v1607
    %v1609 = vrot.slane %v55, %v1608
    %v1610 = vlaneseq
    %v1611 = vshrl.u32 %v1610, 7
    %v1612 = vsub.s32 2, %v1611
    %v1613 = vrot.slane %v55, %v1612
    %v1614 = vlaneseq
    %v1615 = vshrl.u32 %v1614, 7
    %v1616 = vsub.s32 3, %v1615
    %v1617 = vrot.slane %v55, %v1616
    %v1618 = vlaneseq
    %v1619 = vshrl.u32 %v1618, 7
    %v1620 = vsub.s32 4, %v1619
    %v1621 = vrot.slane %v55, %v1620
    %1627 = vmatprep.subr.mxu0 %v1277
    %1628 = vmatpush1.msra.mxu0 %v1276
    %1629 = vmatprep.subr.mxu0 %v1272
    %1630 = vmatpush1.msra.mxu0 %v1271
    %1631 = vmatprep.subr.mxu0 %v1267
    %1632 = vmatpush1.msra.mxu0 %v1266
    %1633 = vmatprep.subr.mxu0 %v1262
    %1634 = vmatpush1.msra.mxu0 %v1261
    %1635 = vmatprep.subr.mxu0 %v1257
    %1636 = vmatpush1.msra.mxu0 %v1256
    %1637 = vmatprep.subr.mxu0 %v1252
    %1638 = vmatpush1.msra.mxu0 %v1251
    %1639 = vmatprep.subr.mxu0 %v1247
    %1640 = vmatpush1.msra.mxu0 %v1246
    %1641 = vmatprep.subr.mxu0 %v1242
    %1642 = vmatpush1.msra.mxu0 %v1241
    %1643 = vmatprep.subr.mxu0 %v1237
    %1644 = vmatpush1.msra.mxu0 %v1236
    %1645 = vmatprep.subr.mxu0 %v1232
    %1646 = vmatpush1.msra.mxu0 %v1231
    %1647 = vmatprep.subr.mxu0 %v1227
    %1648 = vmatpush1.msra.mxu0 %v1226
    %1649 = vmatprep.subr.mxu0 %v1222
    %1650 = vmatpush1.msra.mxu0 %v1221
    %1651 = vmatprep.subr.mxu0 %v1217
    %1652 = vmatpush1.msra.mxu0 %v1216
    %1653 = vmatprep.subr.mxu0 %v1212
    %1654 = vmatpush1.msra.mxu0 %v1211
    %1655 = vmatprep.subr.mxu0 %v1207
    %1656 = vmatpush1.msra.mxu0 %v1206
    %1657 = vmatprep.subr.mxu0 %v1202
    %1658 = vmatpush1.msra.mxu0 %v1201
    %1659 = vmatprep.subr.mxu0 %v1357
    %1660 = vmatpush2.msra.mxu0 %v1356
    %1661 = vmatprep.subr.mxu0 %v1352
    %1662 = vmatpush2.msra.mxu0 %v1351
    %1663 = vmatprep.subr.mxu0 %v1347
    %1664 = vmatpush2.msra.mxu0 %v1346
    %1665 = vmatprep.subr.mxu0 %v1342
    %1666 = vmatpush2.msra.mxu0 %v1341
    %1667 = vmatprep.subr.mxu0 %v1337
    %1668 = vmatpush2.msra.mxu0 %v1336
    %1669 = vmatprep.subr.mxu0 %v1332
    %1670 = vmatpush2.msra.mxu0 %v1331
    %1671 = vmatprep.subr.mxu0 %v1327
    %1672 = vmatpush2.msra.mxu0 %v1326
    %1673 = vmatprep.subr.mxu0 %v1322
    %1674 = vmatpush2.msra.mxu0 %v1321
    %1675 = vmatprep.subr.mxu0 %v1317
    %1676 = vmatpush2.msra.mxu0 %v1316
    %1677 = vmatprep.subr.mxu0 %v1312
    %1678 = vmatpush2.msra.mxu0 %v1311
    %1679 = vmatprep.subr.mxu0 %v1307
    %1680 = vmatpush2.msra.mxu0 %v1306
    %1681 = vmatprep.subr.mxu0 %v1302
    %1682 = vmatpush2.msra.mxu0 %v1301
    %1683 = vmatprep.subr.mxu0 %v1297
    %1684 = vmatpush2.msra.mxu0 %v1296
    %1685 = vmatprep.subr.mxu0 %v1292
    %1686 = vmatpush2.msra.mxu0 %v1291
    %1687 = vmatprep.subr.mxu0 %v1287
    %1688 = vmatpush2.msra.mxu0 %v1286
    %1689 = vmatprep.subr.mxu0 %v1282
    %1690 = vmatpush2.msra.mxu0 %v1281
    %1691 = vmatprep.mubr.f32.mxu0 %v1196
    %1692 = vmatmul.mubr.f32.gmra.mxu0 %v1195
    %v1693 = vpop.f32.mrf.mxu0
    %v1694 = vadd.f32 %v1605, %v1693
    %v1695 = vpop.f32.mrf.mxu0
    %v1696 = vadd.f32 %v1609, %v1695
    %1697 = vdwg.mxu0
    %1698 = vmatprep.subr.mxu0 %v1437
    %1699 = vmatpush1.msra.mxu0 %v1436
    %1700 = vmatprep.subr.mxu0 %v1432
    %1701 = vmatpush1.msra.mxu0 %v1431
    %1702 = vmatprep.subr.mxu0 %v1427
    %1703 = vmatpush1.msra.mxu0 %v1426
    %1704 = vmatprep.subr.mxu0 %v1422
    %1705 = vmatpush1.msra.mxu0 %v1421
    %1706 = vmatprep.subr.mxu0 %v1417
    %1707 = vmatpush1.msra.mxu0 %v1416
    %1708 = vmatprep.subr.mxu0 %v1412
    %1709 = vmatpush1.msra.mxu0 %v1411
    %1710 = vmatprep.subr.mxu0 %v1407
    %1711 = vmatpush1.msra.mxu0 %v1406
    %1712 = vmatprep.subr.mxu0 %v1402
    %1713 = vmatpush1.msra.mxu0 %v1401
    %1714 = vmatprep.subr.mxu0 %v1397
    %1715 = vmatpush1.msra.mxu0 %v1396
    %1716 = vmatprep.subr.mxu0 %v1392
    %1717 = vmatpush1.msra.mxu0 %v1391
    %1718 = vmatprep.subr.mxu0 %v1387
    %1719 = vmatpush1.msra.mxu0 %v1386
    %1720 = vmatprep.subr.mxu0 %v1382
    %1721 = vmatpush1.msra.mxu0 %v1381
    %1722 = vmatprep.subr.mxu0 %v1377
    %1723 = vmatpush1.msra.mxu0 %v1376
    %1724 = vmatprep.subr.mxu0 %v1372
    %1725 = vmatpush1.msra.mxu0 %v1371
    %1726 = vmatprep.subr.mxu0 %v1367
    %1727 = vmatpush1.msra.mxu0 %v1366
    %1728 = vmatprep.subr.mxu0 %v1362
    %1729 = vmatpush1.msra.mxu0 %v1361
    %1730 = vmatprep.subr.mxu0 %v1517
    %1731 = vmatpush2.msra.mxu0 %v1516
    %1732 = vmatprep.subr.mxu0 %v1512
    %1733 = vmatpush2.msra.mxu0 %v1511
    %1734 = vmatprep.subr.mxu0 %v1507
    %1735 = vmatpush2.msra.mxu0 %v1506
    %1736 = vmatprep.subr.mxu0 %v1502
    %1737 = vmatpush2.msra.mxu0 %v1501
    %1738 = vmatprep.subr.mxu0 %v1497
    %1739 = vmatpush2.msra.mxu0 %v1496
    %1740 = vmatprep.subr.mxu0 %v1492
    %1741 = vmatpush2.msra.mxu0 %v1491
    %1742 = vmatprep.subr.mxu0 %v1487
    %1743 = vmatpush2.msra.mxu0 %v1486
    %1744 = vmatprep.subr.mxu0 %v1482
    %1745 = vmatpush2.msra.mxu0 %v1481
    %1746 = vmatprep.subr.mxu0 %v1477
    %1747 = vmatpush2.msra.mxu0 %v1476
    %1748 = vmatprep.subr.mxu0 %v1472
    %1749 = vmatpush2.msra.mxu0 %v1471
    %1750 = vmatprep.subr.mxu0 %v1467
    %1751 = vmatpush2.msra.mxu0 %v1466
    %1752 = vmatprep.subr.mxu0 %v1462
    %1753 = vmatpush2.msra.mxu0 %v1461
    %1754 = vmatprep.subr.mxu0 %v1457
    %1755 = vmatpush2.msra.mxu0 %v1456
    %1756 = vmatprep.subr.mxu0 %v1452
    %1757 = vmatpush2.msra.mxu0 %v1451
    %1758 = vmatprep.subr.mxu0 %v1447
    %1759 = vmatpush2.msra.mxu0 %v1446
    %1760 = vmatprep.subr.mxu0 %v1442
    %1761 = vmatpush2.msra.mxu0 %v1441
    %1762 = vmatprep.mubr.f32.mxu0 %v1198
    %1763 = vmatmul.mubr.f32.gmra.mxu0 %v1197
    %v1764 = vpop.f32.mrf.mxu0
    %v1765 = vadd.f32 %v1694, %v1764
    %v1766 = vpop.f32.mrf.mxu0
    %v1767 = vadd.f32 %v1696, %v1766
    %1768 = vdwg.mxu0
    %1769 = vmatprep.subr.mxu0 %v1597
    %1770 = vmatpush1.msra.mxu0 %v1596
    %1771 = vmatprep.subr.mxu0 %v1592
    %1772 = vmatpush1.msra.mxu0 %v1591
    %1773 = vmatprep.subr.mxu0 %v1587
    %1774 = vmatpush1.msra.mxu0 %v1586
    %1775 = vmatprep.subr.mxu0 %v1582
    %1776 = vmatpush1.msra.mxu0 %v1581
    %1777 = vmatprep.subr.mxu0 %v1577
    %1778 = vmatpush1.msra.mxu0 %v1576
    %1779 = vmatprep.subr.mxu0 %v1572
    %1780 = vmatpush1.msra.mxu0 %v1571
    %1781 = vmatprep.subr.mxu0 %v1567
    %1782 = vmatpush1.msra.mxu0 %v1566
    %1783 = vmatprep.subr.mxu0 %v1562
    %1784 = vmatpush1.msra.mxu0 %v1561
    %1785 = vmatprep.subr.mxu0 %v1557
    %1786 = vmatpush1.msra.mxu0 %v1556
    %1787 = vmatprep.subr.mxu0 %v1552
    %1788 = vmatpush1.msra.mxu0 %v1551
    %1789 = vmatprep.subr.mxu0 %v1547
    %1790 = vmatpush1.msra.mxu0 %v1546
    %1791 = vmatprep.subr.mxu0 %v1542
    %1792 = vmatpush1.msra.mxu0 %v1541
    %1793 = vmatprep.subr.mxu0 %v1537
    %1794 = vmatpush1.msra.mxu0 %v1536
    %1795 = vmatprep.subr.mxu0 %v1532
    %1796 = vmatpush1.msra.mxu0 %v1531
    %1797 = vmatprep.subr.mxu0 %v1527
    %1798 = vmatpush1.msra.mxu0 %v1526
    %1799 = vmatprep.subr.mxu0 %v1522
    %1800 = vmatpush1.msra.mxu0 %v1521
    %1801 = vmatprep.subr.mxu0 0.0
    %1802 = vmatpush2.msra.mxu0 0.0
    %1803 = vmatprep.subr.mxu0 0.0
    %1804 = vmatpush2.msra.mxu0 0.0
    %1805 = vmatprep.subr.mxu0 0.0
    %1806 = vmatpush2.msra.mxu0 0.0
    %1807 = vmatprep.subr.mxu0 0.0
    %1808 = vmatpush2.msra.mxu0 0.0
    %1809 = vmatprep.subr.mxu0 0.0
    %1810 = vmatpush2.msra.mxu0 0.0
    %1811 = vmatprep.subr.mxu0 0.0
    %1812 = vmatpush2.msra.mxu0 0.0
    %1813 = vmatprep.subr.mxu0 0.0
    %1814 = vmatpush2.msra.mxu0 0.0
    %1815 = vmatprep.subr.mxu0 0.0
    %1816 = vmatpush2.msra.mxu0 0.0
    %1817 = vmatprep.subr.mxu0 0.0
    %1818 = vmatpush2.msra.mxu0 0.0
    %1819 = vmatprep.subr.mxu0 0.0
    %1820 = vmatpush2.msra.mxu0 0.0
    %1821 = vmatprep.subr.mxu0 0.0
    %1822 = vmatpush2.msra.mxu0 0.0
    %1823 = vmatprep.subr.mxu0 0.0
    %1824 = vmatpush2.msra.mxu0 0.0
    %1825 = vmatprep.subr.mxu0 0.0
    %1826 = vmatpush2.msra.mxu0 0.0
    %1827 = vmatprep.subr.mxu0 0.0
    %1828 = vmatpush2.msra.mxu0 0.0
    %1829 = vmatprep.subr.mxu0 0.0
    %1830 = vmatpush2.msra.mxu0 0.0
    %1831 = vmatprep.subr.mxu0 0.0
    %1832 = vmatpush2.msra.mxu0 0.0
    %1833 = vmatprep.mubr.f32.mxu0 0.0
    %1834 = vmatmul.mubr.f32.gmra.mxu0 %v1199
    %v1835 = vpop.f32.mrf.mxu0
    %v1836 = vadd.f32 %v1765, %v1835
    %v1837 = vpop.f32.mrf.mxu0
    %v1838 = vadd.f32 %v1767, %v1837
    %1839 = vdwg.mxu0
    %1840 = vmatprep.subr.mxu0 %v1279
    %1841 = vmatpush1.msra.mxu0 %v1278
    %1842 = vmatprep.subr.mxu0 %v1274
    %1843 = vmatpush1.msra.mxu0 %v1273
    %1844 = vmatprep.subr.mxu0 %v1269
    %1845 = vmatpush1.msra.mxu0 %v1268
    %1846 = vmatprep.subr.mxu0 %v1264
    %1847 = vmatpush1.msra.mxu0 %v1263
    %1848 = vmatprep.subr.mxu0 %v1259
    %1849 = vmatpush1.msra.mxu0 %v1258
    %1850 = vmatprep.subr.mxu0 %v1254
    %1851 = vmatpush1.msra.mxu0 %v1253
    %1852 = vmatprep.subr.mxu0 %v1249
    %1853 = vmatpush1.msra.mxu0 %v1248
    %1854 = vmatprep.subr.mxu0 %v1244
    %1855 = vmatpush1.msra.mxu0 %v1243
    %1856 = vmatprep.subr.mxu0 %v1239
    %1857 = vmatpush1.msra.mxu0 %v1238
    %1858 = vmatprep.subr.mxu0 %v1234
    %1859 = vmatpush1.msra.mxu0 %v1233
    %1860 = vmatprep.subr.mxu0 %v1229
    %1861 = vmatpush1.msra.mxu0 %v1228
    %1862 = vmatprep.subr.mxu0 %v1224
    %1863 = vmatpush1.msra.mxu0 %v1223
    %1864 = vmatprep.subr.mxu0 %v1219
    %1865 = vmatpush1.msra.mxu0 %v1218
    %1866 = vmatprep.subr.mxu0 %v1214
    %1867 = vmatpush1.msra.mxu0 %v1213
    %1868 = vmatprep.subr.mxu0 %v1209
    %1869 = vmatpush1.msra.mxu0 %v1208
    %1870 = vmatprep.subr.mxu0 %v1204
    %1871 = vmatpush1.msra.mxu0 %v1203
    %1872 = vmatprep.subr.mxu0 %v1359
    %1873 = vmatpush2.msra.mxu0 %v1358
    %1874 = vmatprep.subr.mxu0 %v1354
    %1875 = vmatpush2.msra.mxu0 %v1353
    %1876 = vmatprep.subr.mxu0 %v1349
    %1877 = vmatpush2.msra.mxu0 %v1348
    %1878 = vmatprep.subr.mxu0 %v1344
    %1879 = vmatpush2.msra.mxu0 %v1343
    %1880 = vmatprep.subr.mxu0 %v1339
    %1881 = vmatpush2.msra.mxu0 %v1338
    %1882 = vmatprep.subr.mxu0 %v1334
    %1883 = vmatpush2.msra.mxu0 %v1333
    %1884 = vmatprep.subr.mxu0 %v1329
    %1885 = vmatpush2.msra.mxu0 %v1328
    %1886 = vmatprep.subr.mxu0 %v1324
    %1887 = vmatpush2.msra.mxu0 %v1323
    %1888 = vmatprep.subr.mxu0 %v1319
    %1889 = vmatpush2.msra.mxu0 %v1318
    %1890 = vmatprep.subr.mxu0 %v1314
    %1891 = vmatpush2.msra.mxu0 %v1313
    %1892 = vmatprep.subr.mxu0 %v1309
    %1893 = vmatpush2.msra.mxu0 %v1308
    %1894 = vmatprep.subr.mxu0 %v1304
    %1895 = vmatpush2.msra.mxu0 %v1303
    %1896 = vmatprep.subr.mxu0 %v1299
    %1897 = vmatpush2.msra.mxu0 %v1298
    %1898 = vmatprep.subr.mxu0 %v1294
    %1899 = vmatpush2.msra.mxu0 %v1293
    %1900 = vmatprep.subr.mxu0 %v1289
    %1901 = vmatpush2.msra.mxu0 %v1288
    %1902 = vmatprep.subr.mxu0 %v1284
    %1903 = vmatpush2.msra.mxu0 %v1283
    %1904 = vmatprep.mubr.f32.mxu0 %v1196
    %1905 = vmatmul.mubr.f32.gmra.mxu0 %v1195
    %v1906 = vpop.f32.mrf.mxu0
    %v1907 = vadd.f32 %v1613, %v1906
    %v1908 = vpop.f32.mrf.mxu0
    %v1909 = vadd.f32 %v1617, %v1908
    %1910 = vdwg.mxu0
    %1911 = vmatprep.subr.mxu0 %v1439
    %1912 = vmatpush1.msra.mxu0 %v1438
    %1913 = vmatprep.subr.mxu0 %v1434
    %1914 = vmatpush1.msra.mxu0 %v1433
    %1915 = vmatprep.subr.mxu0 %v1429
    %1916 = vmatpush1.msra.mxu0 %v1428
    %1917 = vmatprep.subr.mxu0 %v1424
    %1918 = vmatpush1.msra.mxu0 %v1423
    %1919 = vmatprep.subr.mxu0 %v1419
    %1920 = vmatpush1.msra.mxu0 %v1418
    %1921 = vmatprep.subr.mxu0 %v1414
    %1922 = vmatpush1.msra.mxu0 %v1413
    %1923 = vmatprep.subr.mxu0 %v1409
    %1924 = vmatpush1.msra.mxu0 %v1408
    %1925 = vmatprep.subr.mxu0 %v1404
    %1926 = vmatpush1.msra.mxu0 %v1403
    %1927 = vmatprep.subr.mxu0 %v1399
    %1928 = vmatpush1.msra.mxu0 %v1398
    %1929 = vmatprep.subr.mxu0 %v1394
    %1930 = vmatpush1.msra.mxu0 %v1393
    %1931 = vmatprep.subr.mxu0 %v1389
    %1932 = vmatpush1.msra.mxu0 %v1388
    %1933 = vmatprep.subr.mxu0 %v1384
    %1934 = vmatpush1.msra.mxu0 %v1383
    %1935 = vmatprep.subr.mxu0 %v1379
    %1936 = vmatpush1.msra.mxu0 %v1378
    %1937 = vmatprep.subr.mxu0 %v1374
    %1938 = vmatpush1.msra.mxu0 %v1373
    %1939 = vmatprep.subr.mxu0 %v1369
    %1940 = vmatpush1.msra.mxu0 %v1368
    %1941 = vmatprep.subr.mxu0 %v1364
    %1942 = vmatpush1.msra.mxu0 %v1363
    %1943 = vmatprep.subr.mxu0 %v1519
    %1944 = vmatpush2.msra.mxu0 %v1518
    %1945 = vmatprep.subr.mxu0 %v1514
    %1946 = vmatpush2.msra.mxu0 %v1513
    %1947 = vmatprep.subr.mxu0 %v1509
    %1948 = vmatpush2.msra.mxu0 %v1508
    %1949 = vmatprep.subr.mxu0 %v1504
    %1950 = vmatpush2.msra.mxu0 %v1503
    %1951 = vmatprep.subr.mxu0 %v1499
    %1952 = vmatpush2.msra.mxu0 %v1498
    %1953 = vmatprep.subr.mxu0 %v1494
    %1954 = vmatpush2.msra.mxu0 %v1493
    %1955 = vmatprep.subr.mxu0 %v1489
    %1956 = vmatpush2.msra.mxu0 %v1488
    %1957 = vmatprep.subr.mxu0 %v1484
    %1958 = vmatpush2.msra.mxu0 %v1483
    %1959 = vmatprep.subr.mxu0 %v1479
    %1960 = vmatpush2.msra.mxu0 %v1478
    %1961 = vmatprep.subr.mxu0 %v1474
    %1962 = vmatpush2.msra.mxu0 %v1473
    %1963 = vmatprep.subr.mxu0 %v1469
    %1964 = vmatpush2.msra.mxu0 %v1468
    %1965 = vmatprep.subr.mxu0 %v1464
    %1966 = vmatpush2.msra.mxu0 %v1463
    %1967 = vmatprep.subr.mxu0 %v1459
    %1968 = vmatpush2.msra.mxu0 %v1458
    %1969 = vmatprep.subr.mxu0 %v1454
    %1970 = vmatpush2.msra.mxu0 %v1453
    %1971 = vmatprep.subr.mxu0 %v1449
    %1972 = vmatpush2.msra.mxu0 %v1448
    %1973 = vmatprep.subr.mxu0 %v1444
    %1974 = vmatpush2.msra.mxu0 %v1443
    %1975 = vmatprep.mubr.f32.mxu0 %v1198
    %1976 = vmatmul.mubr.f32.gmra.mxu0 %v1197
    %v1977 = vpop.f32.mrf.mxu0
    %v1978 = vadd.f32 %v1907, %v1977
    %v1979 = vpop.f32.mrf.mxu0
    %v1980 = vadd.f32 %v1909, %v1979
    %1981 = vdwg.mxu0
    %1982 = vmatprep.subr.mxu0 %v1599
    %1983 = vmatpush1.msra.mxu0 %v1598
    %1984 = vmatprep.subr.mxu0 %v1594
    %1985 = vmatpush1.msra.mxu0 %v1593
    %1986 = vmatprep.subr.mxu0 %v1589
    %1987 = vmatpush1.msra.mxu0 %v1588
    %1988 = vmatprep.subr.mxu0 %v1584
    %1989 = vmatpush1.msra.mxu0 %v1583
    %1990 = vmatprep.subr.mxu0 %v1579
    %1991 = vmatpush1.msra.mxu0 %v1578
    %1992 = vmatprep.subr.mxu0 %v1574
    %1993 = vmatpush1.msra.mxu0 %v1573
    %1994 = vmatprep.subr.mxu0 %v1569
    %1995 = vmatpush1.msra.mxu0 %v1568
    %1996 = vmatprep.subr.mxu0 %v1564
    %1997 = vmatpush1.msra.mxu0 %v1563
    %1998 = vmatprep.subr.mxu0 %v1559
    %1999 = vmatpush1.msra.mxu0 %v1558
    %2000 = vmatprep.subr.mxu0 %v1554
    %2001 = vmatpush1.msra.mxu0 %v1553
    %2002 = vmatprep.subr.mxu0 %v1549
    %2003 = vmatpush1.msra.mxu0 %v1548
    %2004 = vmatprep.subr.mxu0 %v1544
    %2005 = vmatpush1.msra.mxu0 %v1543
    %2006 = vmatprep.subr.mxu0 %v1539
    %2007 = vmatpush1.msra.mxu0 %v1538
    %2008 = vmatprep.subr.mxu0 %v1534
    %2009 = vmatpush1.msra.mxu0 %v1533
    %2010 = vmatprep.subr.mxu0 %v1529
    %2011 = vmatpush1.msra.mxu0 %v1528
    %2012 = vmatprep.subr.mxu0 %v1524
    %2013 = vmatpush1.msra.mxu0 %v1523
    %2014 = vmatprep.subr.mxu0 0.0
    %2015 = vmatpush2.msra.mxu0 0.0
    %2016 = vmatprep.subr.mxu0 0.0
    %2017 = vmatpush2.msra.mxu0 0.0
    %2018 = vmatprep.subr.mxu0 0.0
    %2019 = vmatpush2.msra.mxu0 0.0
    %2020 = vmatprep.subr.mxu0 0.0
    %2021 = vmatpush2.msra.mxu0 0.0
    %2022 = vmatprep.subr.mxu0 0.0
    %2023 = vmatpush2.msra.mxu0 0.0
    %2024 = vmatprep.subr.mxu0 0.0
    %2025 = vmatpush2.msra.mxu0 0.0
    %2026 = vmatprep.subr.mxu0 0.0
    %2027 = vmatpush2.msra.mxu0 0.0
    %2028 = vmatprep.subr.mxu0 0.0
    %2029 = vmatpush2.msra.mxu0 0.0
    %2030 = vmatprep.subr.mxu0 0.0
    %2031 = vmatpush2.msra.mxu0 0.0
    %2032 = vmatprep.subr.mxu0 0.0
    %2033 = vmatpush2.msra.mxu0 0.0
    %2034 = vmatprep.subr.mxu0 0.0
    %2035 = vmatpush2.msra.mxu0 0.0
    %2036 = vmatprep.subr.mxu0 0.0
    %2037 = vmatpush2.msra.mxu0 0.0
    %2038 = vmatprep.subr.mxu0 0.0
    %2039 = vmatpush2.msra.mxu0 0.0
    %2040 = vmatprep.subr.mxu0 0.0
    %2041 = vmatpush2.msra.mxu0 0.0
    %2042 = vmatprep.subr.mxu0 0.0
    %2043 = vmatpush2.msra.mxu0 0.0
    %2044 = vmatprep.subr.mxu0 0.0
    %2045 = vmatpush2.msra.mxu0 0.0
    %2046 = vmatprep.mubr.f32.mxu0 0.0
    %2047 = vmatmul.mubr.f32.gmra.mxu0 %v1199
    %v2048 = vpop.f32.mrf.mxu0
    %v2049 = vadd.f32 %v1978, %v2048
    %v2050 = vpop.f32.mrf.mxu0
    %v2051 = vadd.f32 %v1980, %v2050
    %2052 = vdwg.mxu0
    %2053 = vmatprep.subr.mxu0 0.0
    %2054 = vmatpush1.msra.mxu0 %v1280
    %2055 = vmatprep.subr.mxu0 0.0
    %2056 = vmatpush1.msra.mxu0 %v1275
    %2057 = vmatprep.subr.mxu0 0.0
    %2058 = vmatpush1.msra.mxu0 %v1270
    %2059 = vmatprep.subr.mxu0 0.0
    %2060 = vmatpush1.msra.mxu0 %v1265
    %2061 = vmatprep.subr.mxu0 0.0
    %2062 = vmatpush1.msra.mxu0 %v1260
    %2063 = vmatprep.subr.mxu0 0.0
    %2064 = vmatpush1.msra.mxu0 %v1255
    %2065 = vmatprep.subr.mxu0 0.0
    %2066 = vmatpush1.msra.mxu0 %v1250
    %2067 = vmatprep.subr.mxu0 0.0
    %2068 = vmatpush1.msra.mxu0 %v1245
    %2069 = vmatprep.subr.mxu0 0.0
    %2070 = vmatpush1.msra.mxu0 %v1240
    %2071 = vmatprep.subr.mxu0 0.0
    %2072 = vmatpush1.msra.mxu0 %v1235
    %2073 = vmatprep.subr.mxu0 0.0
    %2074 = vmatpush1.msra.mxu0 %v1230
    %2075 = vmatprep.subr.mxu0 0.0
    %2076 = vmatpush1.msra.mxu0 %v1225
    %2077 = vmatprep.subr.mxu0 0.0
    %2078 = vmatpush1.msra.mxu0 %v1220
    %2079 = vmatprep.subr.mxu0 0.0
    %2080 = vmatpush1.msra.mxu0 %v1215
    %2081 = vmatprep.subr.mxu0 0.0
    %2082 = vmatpush1.msra.mxu0 %v1210
    %2083 = vmatprep.subr.mxu0 0.0
    %2084 = vmatpush1.msra.mxu0 %v1205
    %2085 = vmatprep.subr.mxu0 0.0
    %2086 = vmatpush2.msra.mxu0 %v1360
    %2087 = vmatprep.subr.mxu0 0.0
    %2088 = vmatpush2.msra.mxu0 %v1355
    %2089 = vmatprep.subr.mxu0 0.0
    %2090 = vmatpush2.msra.mxu0 %v1350
    %2091 = vmatprep.subr.mxu0 0.0
    %2092 = vmatpush2.msra.mxu0 %v1345
    %2093 = vmatprep.subr.mxu0 0.0
    %2094 = vmatpush2.msra.mxu0 %v1340
    %2095 = vmatprep.subr.mxu0 0.0
    %2096 = vmatpush2.msra.mxu0 %v1335
    %2097 = vmatprep.subr.mxu0 0.0
    %2098 = vmatpush2.msra.mxu0 %v1330
    %2099 = vmatprep.subr.mxu0 0.0
    %2100 = vmatpush2.msra.mxu0 %v1325
    %2101 = vmatprep.subr.mxu0 0.0
    %2102 = vmatpush2.msra.mxu0 %v1320
    %2103 = vmatprep.subr.mxu0 0.0
    %2104 = vmatpush2.msra.mxu0 %v1315
    %2105 = vmatprep.subr.mxu0 0.0
    %2106 = vmatpush2.msra.mxu0 %v1310
    %2107 = vmatprep.subr.mxu0 0.0
    %2108 = vmatpush2.msra.mxu0 %v1305
    %2109 = vmatprep.subr.mxu0 0.0
    %2110 = vmatpush2.msra.mxu0 %v1300
    %2111 = vmatprep.subr.mxu0 0.0
    %2112 = vmatpush2.msra.mxu0 %v1295
    %2113 = vmatprep.subr.mxu0 0.0
    %2114 = vmatpush2.msra.mxu0 %v1290
    %2115 = vmatprep.subr.mxu0 0.0
    %2116 = vmatpush2.msra.mxu0 %v1285
    %2117 = vmatprep.mubr.f32.mxu0 %v1196
    %2118 = vmatmul.mubr.f32.gmra.mxu0 %v1195
    %v2119 = vpop.f32.mrf.mxu0
    %v2120 = vadd.f32 %v1621, %v2119
    %v2121 = vpop.f32.mrf.mxu0
    %2122 = vdwg.mxu0
    %2123 = vmatprep.subr.mxu0 0.0
    %2124 = vmatpush1.msra.mxu0 %v1440
    %2125 = vmatprep.subr.mxu0 0.0
    %2126 = vmatpush1.msra.mxu0 %v1435
    %2127 = vmatprep.subr.mxu0 0.0
    %2128 = vmatpush1.msra.mxu0 %v1430
    %2129 = vmatprep.subr.mxu0 0.0
    %2130 = vmatpush1.msra.mxu0 %v1425
    %2131 = vmatprep.subr.mxu0 0.0
    %2132 = vmatpush1.msra.mxu0 %v1420
    %2133 = vmatprep.subr.mxu0 0.0
    %2134 = vmatpush1.msra.mxu0 %v1415
    %2135 = vmatprep.subr.mxu0 0.0
    %2136 = vmatpush1.msra.mxu0 %v1410
    %2137 = vmatprep.subr.mxu0 0.0
    %2138 = vmatpush1.msra.mxu0 %v1405
    %2139 = vmatprep.subr.mxu0 0.0
    %2140 = vmatpush1.msra.mxu0 %v1400
    %2141 = vmatprep.subr.mxu0 0.0
    %2142 = vmatpush1.msra.mxu0 %v1395
    %2143 = vmatprep.subr.mxu0 0.0
    %2144 = vmatpush1.msra.mxu0 %v1390
    %2145 = vmatprep.subr.mxu0 0.0
    %2146 = vmatpush1.msra.mxu0 %v1385
    %2147 = vmatprep.subr.mxu0 0.0
    %2148 = vmatpush1.msra.mxu0 %v1380
    %2149 = vmatprep.subr.mxu0 0.0
    %2150 = vmatpush1.msra.mxu0 %v1375
    %2151 = vmatprep.subr.mxu0 0.0
    %2152 = vmatpush1.msra.mxu0 %v1370
    %2153 = vmatprep.subr.mxu0 0.0
    %2154 = vmatpush1.msra.mxu0 %v1365
    %2155 = vmatprep.subr.mxu0 0.0
    %2156 = vmatpush2.msra.mxu0 %v1520
    %2157 = vmatprep.subr.mxu0 0.0
    %2158 = vmatpush2.msra.mxu0 %v1515
    %2159 = vmatprep.subr.mxu0 0.0
    %2160 = vmatpush2.msra.mxu0 %v1510
    %2161 = vmatprep.subr.mxu0 0.0
    %2162 = vmatpush2.msra.mxu0 %v1505
    %2163 = vmatprep.subr.mxu0 0.0
    %2164 = vmatpush2.msra.mxu0 %v1500
    %2165 = vmatprep.subr.mxu0 0.0
    %2166 = vmatpush2.msra.mxu0 %v1495
    %2167 = vmatprep.subr.mxu0 0.0
    %2168 = vmatpush2.msra.mxu0 %v1490
    %2169 = vmatprep.subr.mxu0 0.0
    %2170 = vmatpush2.msra.mxu0 %v1485
    %2171 = vmatprep.subr.mxu0 0.0
    %2172 = vmatpush2.msra.mxu0 %v1480
    %2173 = vmatprep.subr.mxu0 0.0
    %2174 = vmatpush2.msra.mxu0 %v1475
    %2175 = vmatprep.subr.mxu0 0.0
    %2176 = vmatpush2.msra.mxu0 %v1470
    %2177 = vmatprep.subr.mxu0 0.0
    %2178 = vmatpush2.msra.mxu0 %v1465
    %2179 = vmatprep.subr.mxu0 0.0
    %2180 = vmatpush2.msra.mxu0 %v1460
    %2181 = vmatprep.subr.mxu0 0.0
    %2182 = vmatpush2.msra.mxu0 %v1455
    %2183 = vmatprep.subr.mxu0 0.0
    %2184 = vmatpush2.msra.mxu0 %v1450
    %2185 = vmatprep.subr.mxu0 0.0
    %2186 = vmatpush2.msra.mxu0 %v1445
    %2187 = vmatprep.mubr.f32.mxu0 %v1198
    %2188 = vmatmul.mubr.f32.gmra.mxu0 %v1197
    %v2189 = vpop.f32.mrf.mxu0
    %v2190 = vadd.f32 %v2120, %v2189
    %v2191 = vpop.f32.mrf.mxu0
    %2192 = vdwg.mxu0
    %2193 = vmatprep.subr.mxu0 0.0
    %2194 = vmatpush1.msra.mxu0 %v1600
    %2195 = vmatprep.subr.mxu0 0.0
    %2196 = vmatpush1.msra.mxu0 %v1595
    %2197 = vmatprep.subr.mxu0 0.0
    %2198 = vmatpush1.msra.mxu0 %v1590
    %2199 = vmatprep.subr.mxu0 0.0
    %2200 = vmatpush1.msra.mxu0 %v1585
    %2201 = vmatprep.subr.mxu0 0.0
    %2202 = vmatpush1.msra.mxu0 %v1580
    %2203 = vmatprep.subr.mxu0 0.0
    %2204 = vmatpush1.msra.mxu0 %v1575
    %2205 = vmatprep.subr.mxu0 0.0
    %2206 = vmatpush1.msra.mxu0 %v1570
    %2207 = vmatprep.subr.mxu0 0.0
    %2208 = vmatpush1.msra.mxu0 %v1565
    %2209 = vmatprep.subr.mxu0 0.0
    %2210 = vmatpush1.msra.mxu0 %v1560
    %2211 = vmatprep.subr.mxu0 0.0
    %2212 = vmatpush1.msra.mxu0 %v1555
    %2213 = vmatprep.subr.mxu0 0.0
    %2214 = vmatpush1.msra.mxu0 %v1550
    %2215 = vmatprep.subr.mxu0 0.0
    %2216 = vmatpush1.msra.mxu0 %v1545
    %2217 = vmatprep.subr.mxu0 0.0
    %2218 = vmatpush1.msra.mxu0 %v1540
    %2219 = vmatprep.subr.mxu0 0.0
    %2220 = vmatpush1.msra.mxu0 %v1535
    %2221 = vmatprep.subr.mxu0 0.0
    %2222 = vmatpush1.msra.mxu0 %v1530
    %2223 = vmatprep.subr.mxu0 0.0
    %2224 = vmatpush1.msra.mxu0 %v1525
    %2225 = vmatprep.subr.mxu0 0.0
    %2226 = vmatpush2.msra.mxu0 0.0
    %2227 = vmatprep.subr.mxu0 0.0
    %2228 = vmatpush2.msra.mxu0 0.0
    %2229 = vmatprep.subr.mxu0 0.0
    %2230 = vmatpush2.msra.mxu0 0.0
    %2231 = vmatprep.subr.mxu0 0.0
    %2232 = vmatpush2.msra.mxu0 0.0
    %2233 = vmatprep.subr.mxu0 0.0
    %2234 = vmatpush2.msra.mxu0 0.0
    %2235 = vmatprep.subr.mxu0 0.0
    %2236 = vmatpush2.msra.mxu0 0.0
    %2237 = vmatprep.subr.mxu0 0.0
    %2238 = vmatpush2.msra.mxu0 0.0
    %2239 = vmatprep.subr.mxu0 0.0
    %2240 = vmatpush2.msra.mxu0 0.0
    %2241 = vmatprep.subr.mxu0 0.0
    %2242 = vmatpush2.msra.mxu0 0.0
    %2243 = vmatprep.subr.mxu0 0.0
    %2244 = vmatpush2.msra.mxu0 0.0
    %2245 = vmatprep.subr.mxu0 0.0
    %2246 = vmatpush2.msra.mxu0 0.0
    %2247 = vmatprep.subr.mxu0 0.0
    %2248 = vmatpush2.msra.mxu0 0.0
    %2249 = vmatprep.subr.mxu0 0.0
    %2250 = vmatpush2.msra.mxu0 0.0
    %2251 = vmatprep.subr.mxu0 0.0
    %2252 = vmatpush2.msra.mxu0 0.0
    %2253 = vmatprep.subr.mxu0 0.0
    %2254 = vmatpush2.msra.mxu0 0.0
    %2255 = vmatprep.subr.mxu0 0.0
    %2256 = vmatpush2.msra.mxu0 0.0
    %2257 = vmatprep.mubr.f32.mxu0 0.0
    %2258 = vmatmul.mubr.f32.gmra.mxu0 %v1199
    %v2259 = vpop.f32.mrf.mxu0
    %v2260 = vadd.f32 %v2190, %v2259
    %v2261 = vpop.f32.mrf.mxu0
    %2262 = vdwg.mxu0
    %v2263 = vmax.f32 %v1836, 0.0
    %v2264 = vmax.f32 %v1838, 0.0
    %v2265 = vmax.f32 %v2049, 0.0
    %v2266 = vmax.f32 %v2051, 0.0
    %v2267 = vmax.f32 %v2260, 0.0
    %v2269 = vlaneseq
    %v2270 = vshrl.u32 %v2269, 7
    %v2271 = vsub.s32 0, %v2270
    %v2272 = vrot.slane %v59, %v2271
    %v2273 = vlaneseq
    %v2274 = vshrl.u32 %v2273, 7
    %v2275 = vsub.s32 1, %v2274
    %v2276 = vrot.slane %v59, %v2275
    %v2277 = vlaneseq
    %v2278 = vshrl.u32 %v2277, 7
    %v2279 = vsub.s32 2, %v2278
    %v2280 = vrot.slane %v59, %v2279
    %v2281 = vlaneseq
    %v2282 = vshrl.u32 %v2281, 7
    %v2283 = vsub.s32 3, %v2282
    %v2284 = vrot.slane %v59, %v2283
    %v2285 = vlaneseq
    %v2286 = vshrl.u32 %v2285, 7
    %v2287 = vsub.s32 4, %v2286
    %v2288 = vrot.slane %v59, %v2287
    %v2294 = vmul.f32 %v2263, %v2272
    %v2295 = vmul.f32 %v2264, %v2276
    %v2296 = vmul.f32 %v2265, %v2280
    %v2297 = vmul.f32 %v2266, %v2284
    %v2298 = vmul.f32 %v2267, %v2288
    %v2299 = vadd.f32 %v2294, %v2295
    %v2300 = vadd.f32 %v2299, %v2296
    %v2301 = vadd.f32 %v2300, %v2297
    %v2302 = vadd.f32 %v2301, %v2298
    %2303 = vadd.xlane.f32.xlu0 %v2302
    %v2304 = vpop.xlane.xlu0 %2303
    %v2305 = vadd.f32 %v2304, %v60
    %vm2306 = vcmask 7168
    %2307 = vst.msk [vmem:[%s3] sm:$0xff] %vm2306, %v2305
    // Predicated region
    $region22: #{average_mu_forward.1} parent=1 // pred_check
      _
    $region23: #{average_mu_forward.1} parent=1 // pred_check_branch
      %2309 = sbr.rel (0) target = $region25
    $region24: #{average_mu_forward.1} parent=1 // pred_region
      _
    $region25: #{average_mu_forward.1} parent=1 // pred_fallthru
      _
    // Predicated region
    $region26: #{average_mu_forward.1} parent=1 // pred_check
      _
    $region27: #{average_mu_forward.1} parent=1 // pred_check_branch
      %2311 = sbr.rel (0) target = $region29
    $region28: #{average_mu_forward.1} parent=1 // pred_region
      _
    $region29: #{average_mu_forward.1} parent=1 // pred_fallthru
      _
    %2312 = vsyncpa [#allocation3], 1
    %2313 = vsyncpa [#allocation5], 1

</llo_original>
